<compile_context>
chip_gen: v6e
topology: v6e:2x2x1
jax: 0.10.0
libtpu: 0.0.40
codegen_flags: <defaults>
</compile_context>

<pallas_src>
import functools

import jax
import jax.numpy as jnp
from jax import lax
from jax.experimental import pallas as pl
from jax.experimental.pallas import tpu as pltpu

_LN_EPS = 1e-5


def _erf(x):
    # Abramowitz & Stegun 7.1.26 polynomial (|err| < 1.5e-7).
    # TODO(synk): exact lax.erf lowering availability in Mosaic is uncertain; this
    # polynomial reproduces torch's exact-erf GELU to float32 precision.
    a1, a2, a3, a4, a5 = 0.254829592, -0.284496736, 1.421413741, -1.453152027, 1.061405429
    p = 0.3275911
    s = jnp.where(x < 0.0, -1.0, 1.0)
    z = jnp.abs(x)
    t = 1.0 / (1.0 + p * z)
    poly = ((((a5 * t + a4) * t + a3) * t + a2) * t + a1) * t
    return s * (1.0 - poly * jnp.exp(-z * z))


def _gelu_exact(x):
    return 0.5 * x * (1.0 + _erf(x * 0.7071067811865476))


def _layernorm(v, g, b):
    mu = jnp.mean(v, axis=-1, keepdims=True)
    var = jnp.mean((v - mu) ** 2, axis=-1, keepdims=True)
    return (v - mu) * lax.rsqrt(var + _LN_EPS) * g + b


def _transformer_kernel(x_ref, gn_ref, bn_ref, mask_ch_ref, mask_hc_ref, row0_ref,
                        ga_ref, ba_ref, wqkv_ref, wp_ref, bp_ref,
                        gf_ref, bf_ref, w1_ref, b1_ref, w2_ref, b2_ref,
                        out_ref, *, scale):
    """One Transformer layer per grid step; grid = (batch, layer)."""
    layer = pl.program_id(1)

    # First layer for this batch element: seed the activation carry.  The output
    # block index is constant across the layer axis, so out_ref stays resident
    # in VMEM and doubles as the layer-to-layer activation carry.
    @pl.when(layer == 0)
    def _():
        out_ref[0] = x_ref[0]

    x = out_ref[0].astype(jnp.float32)                   # (N, C) carried activation
    N, C = x.shape

    # --- PreNorm for the cross-attention branch ------------------------------
    y = _layernorm(x, ga_ref[0], ba_ref[0])              # (N, C)

    # --- CrossAttention(y): fused QKV, single query token (row 0) ------------
    qkv = jnp.dot(y, wqkv_ref[0], preferred_element_type=jnp.float32)   # (N, 3C)
    q = qkv[0:1, 0:C]                                    # (1, C)
    k = qkv[:, C:2 * C]                                  # (N, C)
    v = qkv[:, 2 * C:3 * C]                              # (N, C)

    # per-head scores via host-precomputed one-hot channel<->head maps
    # scores[n, h] = sum_{d in head h} q[0, d] * k[n, d]
    scores = jnp.dot(q * k, mask_ch_ref[...],
                     preferred_element_type=jnp.float32) * scale        # (N, H)
    m = jnp.max(scores, axis=0, keepdims=True)
    p = jnp.exp(scores - m)
    p = p * pl.reciprocal(jnp.sum(p, axis=0, keepdims=True), approx=True)  # softmax over keys
    p_full = jnp.dot(p, mask_hc_ref[...], preferred_element_type=jnp.float32)  # (N, C)
    attn_vec = jnp.sum(p_full * v, axis=0, keepdims=True)                      # (1, C)

    attn_out = jnp.dot(attn_vec, wp_ref[0], preferred_element_type=jnp.float32) + bp_ref[0]
    block_out = y[0:1, :] + attn_out                     # (1, C)

    # --- cat(block_out, shared_norm(x[1:])) along the sequence ----------------
    rest = _layernorm(x, gn_ref[...], bn_ref[...])       # (N, C); row 0 discarded below
    x_cat = jnp.where(row0_ref[...] > 0.5,
                      jnp.broadcast_to(block_out, (N, C)), rest)

    # --- PreNorm(FeedForward) + residual --------------------------------------
    z = _layernorm(x_cat, gf_ref[0], bf_ref[0])
    h1 = jnp.dot(z, w1_ref[0], preferred_element_type=jnp.float32) + b1_ref[0]
    h1 = _gelu_exact(h1)
    ff = jnp.dot(h1, w2_ref[0], preferred_element_type=jnp.float32) + b2_ref[0]
    out_ref[0] = (ff + x_cat).astype(out_ref.dtype)


@functools.partial(jax.jit, static_argnames=('num_heads',))
def transformer_forward(x, params, num_heads):
    B, N, C = x.shape
    depth, _, M = params['w1'].shape
    hd = C // num_heads
    scale = float(hd) ** -0.5

    # Host-built constants (hoisted out of the kernel; constant-folded by XLA).
    mask_ch = (jnp.arange(C)[:, None] // hd
               == jnp.arange(num_heads)[None, :]).astype(jnp.float32)   # (C, H)
    mask_hc = mask_ch.T                                                 # (H, C)
    row0 = jnp.broadcast_to((jnp.arange(N) == 0)[:, None], (N, C)).astype(jnp.float32)

    kernel = functools.partial(_transformer_kernel, scale=scale)

    def batch_spec(shape):
        return pl.BlockSpec(shape, lambda b, l: (b, 0, 0))

    def const_spec(shape):
        return pl.BlockSpec(shape, lambda b, l: (0,) * len(shape))

    def layer_spec(shape):  # `shape` excludes the leading depth axis
        return pl.BlockSpec((1,) + shape, lambda b, l: (l, 0, 0))

    return pl.pallas_call(
        kernel,
        out_shape=jax.ShapeDtypeStruct((B, N, C), x.dtype),
        grid=(B, depth),
        in_specs=[
            batch_spec((1, N, C)),                                  # x
            const_spec((1, C)), const_spec((1, C)),                 # shared norm gamma/beta
            const_spec((C, num_heads)), const_spec((num_heads, C)),  # head one-hot maps
            const_spec((N, C)),                                     # row-0 mask
            layer_spec((1, C)), layer_spec((1, C)),                 # attn PreNorm gamma/beta
            layer_spec((C, 3 * C)),                                 # fused wq|wk|wv
            layer_spec((C, C)), layer_spec((1, C)),                 # proj weight, bias
            layer_spec((1, C)), layer_spec((1, C)),                 # ff PreNorm gamma/beta
            layer_spec((C, M)), layer_spec((1, M)),                 # ff linear 1
            layer_spec((M, C)), layer_spec((1, C)),                 # ff linear 2
        ],
        out_specs=batch_spec((1, N, C)),
        compiler_params=pltpu.CompilerParams(
            dimension_semantics=("parallel", "arbitrary")),
    )(x, params['gn'], params['bn'], mask_ch, mask_hc, row0,
      params['ga'], params['ba'], params['wqkv'], params['wp'], params['bp'],
      params['gf'], params['bf'], params['w1'], params['b1'],
      params['w2'], params['b2'])


def init_params(key, dim, depth, mlp_dim):
    ks = iter(jax.random.split(key, 13))

    def nrm(shape, scale=1.0):
        return (scale * jax.random.normal(next(ks), shape)).astype(jnp.float32)

    return {
        'gn': 1.0 + 0.1 * nrm((1, dim)),
        'bn': 0.1 * nrm((1, dim)),
        'ga': 1.0 + 0.1 * nrm((depth, 1, dim)),
        'ba': 0.1 * nrm((depth, 1, dim)),
        'wqkv': nrm((depth, dim, 3 * dim), dim ** -0.5),   # [wq | wk | wv], each (dim, dim)
        'wp': nrm((depth, dim, dim), dim ** -0.5),
        'bp': 0.02 * nrm((depth, 1, dim)),
        'gf': 1.0 + 0.1 * nrm((depth, 1, dim)),
        'bf': 0.1 * nrm((depth, 1, dim)),
        'w1': nrm((depth, dim, mlp_dim), dim ** -0.5),
        'b1': 0.02 * nrm((depth, 1, mlp_dim)),
        'w2': nrm((depth, mlp_dim, dim), mlp_dim ** -0.5),
        'b2': 0.02 * nrm((depth, 1, dim)),
    }


def reference_forward(x, params, num_heads):
    """Pure-JAX mirror of the PyTorch forward (eval mode) for validation."""
    def ln(v, g, b):
        mu = v.mean(-1, keepdims=True)
        var = ((v - mu) ** 2).mean(-1, keepdims=True)
        return (v - mu) / jnp.sqrt(var + _LN_EPS) * g + b

    gn, bn = params['gn'], params['bn']
    depth = params['wqkv'].shape[0]
    for d in range(depth):
        B, N, C = x.shape
        hd = C // num_heads
        scale = hd ** -0.5
        wqkv = params['wqkv'][d]
        wq, wk, wv = wqkv[:, 0:C], wqkv[:, C:2 * C], wqkv[:, 2 * C:]
        y = ln(x, params['ga'][d], params['ba'][d])
        q = (y[:, 0:1] @ wq).reshape(B, 1, num_heads, hd).transpose(0, 2, 1, 3)
        k = (y @ wk).reshape(B, N, num_heads, hd).transpose(0, 2, 1, 3)
        v = (y @ wv).reshape(B, N, num_heads, hd).transpose(0, 2, 1, 3)
        attn = jnp.einsum('bhqd,bhkd->bhqk', q, k) * scale
        attn = jax.nn.softmax(attn, axis=-1)
        o = jnp.einsum('bhqk,bhkd->bhqd', attn, v).transpose(0, 2, 1, 3).reshape(B, 1, C)
        o = o @ params['wp'][d] + params['bp'][d]
        block = y[:, 0:1] + o
        x_cat = jnp.concatenate([block, ln(x[:, 1:], gn, bn)], axis=1)
        z = ln(x_cat, params['gf'][d], params['bf'][d])
        h = jax.nn.gelu(z @ params['w1'][d] + params['b1'][d], approximate=False)
        ff = h @ params['w2'][d] + params['b2'][d]
        x = ff + x_cat
    return x


if __name__ == "__main__":
    # Transformer(dim=32, depth=2, heads=4, dim_head=16, mlp_dim=64); input (B, N, dim)
    B, N, C = 2, 8, 32
    heads, mlp_dim, depth = 4, 64, 2

    key = jax.random.PRNGKey(0)
    kx, kp = jax.random.split(key)
    x = jax.random.normal(kx, (B, N, C), jnp.float32)
    params = init_params(kp, C, depth, mlp_dim)

    out = transformer_forward(x, params, num_heads=heads)
    out = jax.block_until_ready(out)
    assert out.shape == (B, N, C)

    ref = reference_forward(x, params, heads)
    err = float(jnp.max(jnp.abs(out - ref)))
    assert err < 2e-2, f"kernel/reference mismatch: max abs err = {err}"

    print("KERNEL_OK")
</pallas_src>

<mosaic_0001>
module attributes {stable_mosaic.version = 11 : i64} {
  func.func @_transformer_kernel(%arg0: i32, %arg1: i32, %arg2: memref<1x8x32xf32, #tpu.memory_space<vmem>>, %arg3: memref<1x32xf32, #tpu.memory_space<vmem>>, %arg4: memref<1x32xf32, #tpu.memory_space<vmem>>, %arg5: memref<32x4xf32, #tpu.memory_space<vmem>>, %arg6: memref<4x32xf32, #tpu.memory_space<vmem>>, %arg7: memref<8x32xf32, #tpu.memory_space<vmem>>, %arg8: memref<1x1x32xf32, #tpu.memory_space<vmem>>, %arg9: memref<1x1x32xf32, #tpu.memory_space<vmem>>, %arg10: memref<1x32x96xf32, #tpu.memory_space<vmem>>, %arg11: memref<1x32x32xf32, #tpu.memory_space<vmem>>, %arg12: memref<1x1x32xf32, #tpu.memory_space<vmem>>, %arg13: memref<1x1x32xf32, #tpu.memory_space<vmem>>, %arg14: memref<1x1x32xf32, #tpu.memory_space<vmem>>, %arg15: memref<1x32x64xf32, #tpu.memory_space<vmem>>, %arg16: memref<1x1x64xf32, #tpu.memory_space<vmem>>, %arg17: memref<1x64x32xf32, #tpu.memory_space<vmem>>, %arg18: memref<1x1x32xf32, #tpu.memory_space<vmem>>, %arg19: memref<1x8x32xf32, #tpu.memory_space<vmem>>) attributes {dimension_semantics = [#tpu.dimension_semantics<parallel>, #tpu.dimension_semantics<arbitrary>], iteration_bounds = array<i64: 2, 2>, scalar_prefetch = 0 : i64, scratch_operands = 0 : i64, tpu.core_type = #tpu.core_type<tc>, window_params = [{transform_indices = @transform_0, window_bounds = array<i64: 1, 8, 32>}, {pipeline_mode = #tpu.pipeline_mode<synchronous>, transform_indices = @transform_1, window_bounds = array<i64: 1, 32>}, {pipeline_mode = #tpu.pipeline_mode<synchronous>, transform_indices = @transform_2, window_bounds = array<i64: 1, 32>}, {pipeline_mode = #tpu.pipeline_mode<synchronous>, transform_indices = @transform_3, window_bounds = array<i64: 32, 4>}, {pipeline_mode = #tpu.pipeline_mode<synchronous>, transform_indices = @transform_4, window_bounds = array<i64: 4, 32>}, {pipeline_mode = #tpu.pipeline_mode<synchronous>, transform_indices = @transform_5, window_bounds = array<i64: 8, 32>}, {transform_indices = @transform_6, window_bounds = array<i64: 1, 1, 32>}, {transform_indices = @transform_7, window_bounds = array<i64: 1, 1, 32>}, {transform_indices = @transform_8, window_bounds = array<i64: 1, 32, 96>}, {transform_indices = @transform_9, window_bounds = array<i64: 1, 32, 32>}, {transform_indices = @transform_10, window_bounds = array<i64: 1, 1, 32>}, {transform_indices = @transform_11, window_bounds = array<i64: 1, 1, 32>}, {transform_indices = @transform_12, window_bounds = array<i64: 1, 1, 32>}, {transform_indices = @transform_13, window_bounds = array<i64: 1, 32, 64>}, {transform_indices = @transform_14, window_bounds = array<i64: 1, 1, 64>}, {transform_indices = @transform_15, window_bounds = array<i64: 1, 64, 32>}, {transform_indices = @transform_16, window_bounds = array<i64: 1, 1, 32>}, {transform_indices = @transform_17, window_bounds = array<i64: 1, 8, 32>}]} {
    %c0_i32 = arith.constant 0 : i32
    %0 = arith.cmpi eq, %arg1, %c0_i32 : i32
    %1 = arith.extui %0 : i1 to i32
    %c0_i32_0 = arith.constant 0 : i32
    %2 = arith.cmpi ne, %1, %c0_i32_0 : i32
    scf.if %2 {
      %c0_90 = arith.constant 0 : index
      %c0_91 = arith.constant 0 : index
      %c0_92 = arith.constant 0 : index
      %181 = vector.load %arg2[%c0_90, %c0_91, %c0_92] : memref<1x8x32xf32, #tpu.memory_space<vmem>>, vector<1x8x32xf32>
      %182 = vector.shape_cast %181 : vector<1x8x32xf32> to vector<8x32xf32>
      %c0_93 = arith.constant 0 : index
      %c0_94 = arith.constant 0 : index
      %c0_95 = arith.constant 0 : index
      %183 = vector.load %arg19[%c0_93, %c0_94, %c0_95] : memref<1x8x32xf32, #tpu.memory_space<vmem>>, vector<1x8x32xf32>
      %184 = vector.shape_cast %183 : vector<1x8x32xf32> to vector<8x32xf32>
      %185 = vector.shape_cast %182 : vector<8x32xf32> to vector<1x8x32xf32>
      tpu.vector_store %arg19[%c0_93, %c0_94, %c0_95], %185 {strides = array<i32>} : memref<1x8x32xf32, #tpu.memory_space<vmem>>, vector<1x8x32xf32>,
    } else {
    }
    %c0 = arith.constant 0 : index
    %c0_1 = arith.constant 0 : index
    %c0_2 = arith.constant 0 : index
    %3 = vector.load %arg19[%c0, %c0_1, %c0_2] : memref<1x8x32xf32, #tpu.memory_space<vmem>>, vector<1x8x32xf32>
    %4 = vector.shape_cast %3 : vector<1x8x32xf32> to vector<8x32xf32>
    %c0_3 = arith.constant 0 : index
    %c0_4 = arith.constant 0 : index
    %c0_5 = arith.constant 0 : index
    %5 = vector.load %arg8[%c0_3, %c0_4, %c0_5] : memref<1x1x32xf32, #tpu.memory_space<vmem>>, vector<1x1x32xf32>
    %6 = vector.shape_cast %5 : vector<1x1x32xf32> to vector<1x32xf32>
    %c0_6 = arith.constant 0 : index
    %c0_7 = arith.constant 0 : index
    %c0_8 = arith.constant 0 : index
    %7 = vector.load %arg9[%c0_6, %c0_7, %c0_8] : memref<1x1x32xf32, #tpu.memory_space<vmem>>, vector<1x1x32xf32>
    %8 = vector.shape_cast %7 : vector<1x1x32xf32> to vector<1x32xf32>
    %cst = arith.constant dense<0.000000e+00> : vector<8xf32>
    %9 = vector.multi_reduction <add>, %4, %cst [1] : vector<8x32xf32> to vector<8xf32>
    %10 = vector.shape_cast %9 : vector<8xf32> to vector<8x1xf32>
    %cst_9 = arith.constant 3.200000e+01 : f32
    %11 = vector.broadcast %cst_9 : f32 to vector<8x1xf32>
    %12 = arith.divf %10, %11 : vector<8x1xf32>
    %13 = vector.broadcast %12 : vector<8x1xf32> to vector<8x32xf32>
    %14 = arith.subf %4, %13 : vector<8x32xf32>
    %15 = arith.mulf %14, %14 : vector<8x32xf32>
    %cst_10 = arith.constant dense<0.000000e+00> : vector<8xf32>
    %16 = vector.multi_reduction <add>, %15, %cst_10 [1] : vector<8x32xf32> to vector<8xf32>
    %17 = vector.shape_cast %16 : vector<8xf32> to vector<8x1xf32>
    %cst_11 = arith.constant 3.200000e+01 : f32
    %18 = vector.broadcast %cst_11 : f32 to vector<8x1xf32>
    %19 = arith.divf %17, %18 : vector<8x1xf32>
    %20 = vector.broadcast %12 : vector<8x1xf32> to vector<8x32xf32>
    %21 = arith.subf %4, %20 : vector<8x32xf32>
    %cst_12 = arith.constant 9.99999974E-6 : f32
    %22 = vector.broadcast %cst_12 : f32 to vector<8x1xf32>
    %23 = arith.addf %19, %22 : vector<8x1xf32>
    %24 = math.rsqrt %23 : vector<8x1xf32>
    %25 = vector.broadcast %24 : vector<8x1xf32> to vector<8x32xf32>
    %26 = arith.mulf %21, %25 : vector<8x32xf32>
    %27 = vector.broadcast %6 : vector<1x32xf32> to vector<8x32xf32>
    %28 = arith.mulf %26, %27 : vector<8x32xf32>
    %29 = vector.broadcast %8 : vector<1x32xf32> to vector<8x32xf32>
    %30 = arith.addf %28, %29 : vector<8x32xf32>
    %c0_13 = arith.constant 0 : index
    %c0_14 = arith.constant 0 : index
    %c0_15 = arith.constant 0 : index
    %31 = vector.load %arg10[%c0_13, %c0_14, %c0_15] : memref<1x32x96xf32, #tpu.memory_space<vmem>>, vector<1x32x96xf32>
    %32 = vector.shape_cast %31 : vector<1x32x96xf32> to vector<32x96xf32>
    %cst_16 = arith.constant dense<0.000000e+00> : vector<8x96xf32>
    %33 = tpu.matmul %30, %32, %cst_16 {dimension_numbers = #tpu.dot_dimension_numbers<[1], [0], [0], [1], [0, 0, 1, 1], [], []>} : vector<8x32xf32>, vector<32x96xf32>, vector<8x96xf32> -> vector<8x96xf32>
    %34 = vector.extract_strided_slice %33 {offsets = [0, 0], sizes = [1, 32], strides = [1, 1]} : vector<8x96xf32> to vector<1x32xf32>
    %35 = vector.extract_strided_slice %33 {offsets = [0, 32], sizes = [8, 32], strides = [1, 1]} : vector<8x96xf32> to vector<8x32xf32>
    %36 = vector.extract_strided_slice %33 {offsets = [0, 64], sizes = [8, 32], strides = [1, 1]} : vector<8x96xf32> to vector<8x32xf32>
    %37 = vector.broadcast %34 : vector<1x32xf32> to vector<8x32xf32>
    %38 = arith.mulf %37, %35 : vector<8x32xf32>
    %c0_17 = arith.constant 0 : index
    %c0_18 = arith.constant 0 : index
    %39 = vector.load %arg5[%c0_17, %c0_18] : memref<32x4xf32, #tpu.memory_space<vmem>>, vector<32x4xf32>
    %cst_19 = arith.constant dense<0.000000e+00> : vector<8x4xf32>
    %40 = tpu.matmul %38, %39, %cst_19 {dimension_numbers = #tpu.dot_dimension_numbers<[1], [0], [0], [1], [0, 0, 1, 1], [], []>} : vector<8x32xf32>, vector<32x4xf32>, vector<8x4xf32> -> vector<8x4xf32>
    %cst_20 = arith.constant 0.353553385 : f32
    %41 = vector.broadcast %cst_20 : f32 to vector<8x4xf32>
    %42 = arith.mulf %40, %41 : vector<8x4xf32>
    %cst_21 = arith.constant dense<0xFF800000> : vector<4xf32>
    %43 = vector.multi_reduction <maximumf>, %42, %cst_21 [0] : vector<8x4xf32> to vector<4xf32>
    %44 = vector.shape_cast %43 : vector<4xf32> to vector<1x4xf32>
    %45 = vector.broadcast %44 : vector<1x4xf32> to vector<8x4xf32>
    %46 = arith.subf %42, %45 : vector<8x4xf32>
    %47 = math.exp %46 : vector<8x4xf32>
    %cst_22 = arith.constant dense<0.000000e+00> : vector<4xf32>
    %48 = vector.multi_reduction <add>, %47, %cst_22 [0] : vector<8x4xf32> to vector<4xf32>
    %49 = vector.shape_cast %48 : vector<4xf32> to vector<1x4xf32>
    %50 = tpu.reciprocal %49 {approx = true} : vector<1x4xf32> -> vector<1x4xf32>
    %51 = vector.broadcast %50 : vector<1x4xf32> to vector<8x4xf32>
    %52 = arith.mulf %47, %51 : vector<8x4xf32>
    %c0_23 = arith.constant 0 : index
    %c0_24 = arith.constant 0 : index
    %53 = vector.load %arg6[%c0_23, %c0_24] : memref<4x32xf32, #tpu.memory_space<vmem>>, vector<4x32xf32>
    %cst_25 = arith.constant dense<0.000000e+00> : vector<8x32xf32>
    %54 = tpu.matmul %52, %53, %cst_25 {dimension_numbers = #tpu.dot_dimension_numbers<[1], [0], [0], [1], [0, 0, 1, 1], [], []>} : vector<8x4xf32>, vector<4x32xf32>, vector<8x32xf32> -> vector<8x32xf32>
    %55 = arith.mulf %54, %36 : vector<8x32xf32>
    %cst_26 = arith.constant dense<0.000000e+00> : vector<32xf32>
    %56 = vector.multi_reduction <add>, %55, %cst_26 [0] : vector<8x32xf32> to vector<32xf32>
    %57 = vector.shape_cast %56 : vector<32xf32> to vector<1x32xf32>
    %c0_27 = arith.constant 0 : index
    %c0_28 = arith.constant 0 : index
    %c0_29 = arith.constant 0 : index
    %58 = vector.load %arg11[%c0_27, %c0_28, %c0_29] : memref<1x32x32xf32, #tpu.memory_space<vmem>>, vector<1x32x32xf32>
    %59 = vector.shape_cast %58 : vector<1x32x32xf32> to vector<32x32xf32>
    %cst_30 = arith.constant dense<0.000000e+00> : vector<1x32xf32>
    %60 = tpu.matmul %57, %59, %cst_30 {dimension_numbers = #tpu.dot_dimension_numbers<[1], [0], [0], [1], [0, 0, 1, 1], [], []>} : vector<1x32xf32>, vector<32x32xf32>, vector<1x32xf32> -> vector<1x32xf32>
    %c0_31 = arith.constant 0 : index
    %c0_32 = arith.constant 0 : index
    %c0_33 = arith.constant 0 : index
    %61 = vector.load %arg12[%c0_31, %c0_32, %c0_33] : memref<1x1x32xf32, #tpu.memory_space<vmem>>, vector<1x1x32xf32>
    %62 = vector.shape_cast %61 : vector<1x1x32xf32> to vector<1x32xf32>
    %63 = arith.addf %60, %62 : vector<1x32xf32>
    %64 = vector.extract_strided_slice %30 {offsets = [0, 0], sizes = [1, 32], strides = [1, 1]} : vector<8x32xf32> to vector<1x32xf32>
    %65 = arith.addf %64, %63 : vector<1x32xf32>
    %c0_34 = arith.constant 0 : index
    %c0_35 = arith.constant 0 : index
    %66 = vector.load %arg3[%c0_34, %c0_35] : memref<1x32xf32, #tpu.memory_space<vmem>>, vector<1x32xf32>
    %c0_36 = arith.constant 0 : index
    %c0_37 = arith.constant 0 : index
    %67 = vector.load %arg4[%c0_36, %c0_37] : memref<1x32xf32, #tpu.memory_space<vmem>>, vector<1x32xf32>
    %cst_38 = arith.constant dense<0.000000e+00> : vector<8xf32>
    %68 = vector.multi_reduction <add>, %4, %cst_38 [1] : vector<8x32xf32> to vector<8xf32>
    %69 = vector.shape_cast %68 : vector<8xf32> to vector<8x1xf32>
    %cst_39 = arith.constant 3.200000e+01 : f32
    %70 = vector.broadcast %cst_39 : f32 to vector<8x1xf32>
    %71 = arith.divf %69, %70 : vector<8x1xf32>
    %72 = vector.broadcast %71 : vector<8x1xf32> to vector<8x32xf32>
    %73 = arith.subf %4, %72 : vector<8x32xf32>
    %74 = arith.mulf %73, %73 : vector<8x32xf32>
    %cst_40 = arith.constant dense<0.000000e+00> : vector<8xf32>
    %75 = vector.multi_reduction <add>, %74, %cst_40 [1] : vector<8x32xf32> to vector<8xf32>
    %76 = vector.shape_cast %75 : vector<8xf32> to vector<8x1xf32>
    %cst_41 = arith.constant 3.200000e+01 : f32
    %77 = vector.broadcast %cst_41 : f32 to vector<8x1xf32>
    %78 = arith.divf %76, %77 : vector<8x1xf32>
    %79 = vector.broadcast %71 : vector<8x1xf32> to vector<8x32xf32>
    %80 = arith.subf %4, %79 : vector<8x32xf32>
    %cst_42 = arith.constant 9.99999974E-6 : f32
    %81 = vector.broadcast %cst_42 : f32 to vector<8x1xf32>
    %82 = arith.addf %78, %81 : vector<8x1xf32>
    %83 = math.rsqrt %82 : vector<8x1xf32>
    %84 = vector.broadcast %83 : vector<8x1xf32> to vector<8x32xf32>
    %85 = arith.mulf %80, %84 : vector<8x32xf32>
    %86 = vector.broadcast %66 : vector<1x32xf32> to vector<8x32xf32>
    %87 = arith.mulf %85, %86 : vector<8x32xf32>
    %88 = vector.broadcast %67 : vector<1x32xf32> to vector<8x32xf32>
    %89 = arith.addf %87, %88 : vector<8x32xf32>
    %c0_43 = arith.constant 0 : index
    %c0_44 = arith.constant 0 : index
    %90 = vector.load %arg7[%c0_43, %c0_44] : memref<8x32xf32, #tpu.memory_space<vmem>>, vector<8x32xf32>
    %cst_45 = arith.constant 5.000000e-01 : f32
    %91 = vector.broadcast %cst_45 : f32 to vector<8x32xf32>
    %92 = arith.cmpf ogt, %90, %91 : vector<8x32xf32>
    %93 = vector.shape_cast %65 : vector<1x32xf32> to vector<1x32xf32>
    %94 = vector.broadcast %93 : vector<1x32xf32> to vector<8x32xf32>
    %95 = arith.select %92, %94, %89 : vector<8x32xi1>, vector<8x32xf32>
    %c0_46 = arith.constant 0 : index
    %c0_47 = arith.constant 0 : index
    %c0_48 = arith.constant 0 : index
    %96 = vector.load %arg13[%c0_46, %c0_47, %c0_48] : memref<1x1x32xf32, #tpu.memory_space<vmem>>, vector<1x1x32xf32>
    %97 = vector.shape_cast %96 : vector<1x1x32xf32> to vector<1x32xf32>
    %c0_49 = arith.constant 0 : index
    %c0_50 = arith.constant 0 : index
    %c0_51 = arith.constant 0 : index
    %98 = vector.load %arg14[%c0_49, %c0_50, %c0_51] : memref<1x1x32xf32, #tpu.memory_space<vmem>>, vector<1x1x32xf32>
    %99 = vector.shape_cast %98 : vector<1x1x32xf32> to vector<1x32xf32>
    %cst_52 = arith.constant dense<0.000000e+00> : vector<8xf32>
    %100 = vector.multi_reduction <add>, %95, %cst_52 [1] : vector<8x32xf32> to vector<8xf32>
    %101 = vector.shape_cast %100 : vector<8xf32> to vector<8x1xf32>
    %cst_53 = arith.constant 3.200000e+01 : f32
    %102 = vector.broadcast %cst_53 : f32 to vector<8x1xf32>
    %103 = arith.divf %101, %102 : vector<8x1xf32>
    %104 = vector.broadcast %103 : vector<8x1xf32> to vector<8x32xf32>
    %105 = arith.subf %95, %104 : vector<8x32xf32>
    %106 = arith.mulf %105, %105 : vector<8x32xf32>
    %cst_54 = arith.constant dense<0.000000e+00> : vector<8xf32>
    %107 = vector.multi_reduction <add>, %106, %cst_54 [1] : vector<8x32xf32> to vector<8xf32>
    %108 = vector.shape_cast %107 : vector<8xf32> to vector<8x1xf32>
    %cst_55 = arith.constant 3.200000e+01 : f32
    %109 = vector.broadcast %cst_55 : f32 to vector<8x1xf32>
    %110 = arith.divf %108, %109 : vector<8x1xf32>
    %111 = vector.broadcast %103 : vector<8x1xf32> to vector<8x32xf32>
    %112 = arith.subf %95, %111 : vector<8x32xf32>
    %cst_56 = arith.constant 9.99999974E-6 : f32
    %113 = vector.broadcast %cst_56 : f32 to vector<8x1xf32>
    %114 = arith.addf %110, %113 : vector<8x1xf32>
    %115 = math.rsqrt %114 : vector<8x1xf32>
    %116 = vector.broadcast %115 : vector<8x1xf32> to vector<8x32xf32>
    %117 = arith.mulf %112, %116 : vector<8x32xf32>
    %118 = vector.broadcast %97 : vector<1x32xf32> to vector<8x32xf32>
    %119 = arith.mulf %117, %118 : vector<8x32xf32>
    %120 = vector.broadcast %99 : vector<1x32xf32> to vector<8x32xf32>
    %121 = arith.addf %119, %120 : vector<8x32xf32>
    %c0_57 = arith.constant 0 : index
    %c0_58 = arith.constant 0 : index
    %c0_59 = arith.constant 0 : index
    %122 = vector.load %arg15[%c0_57, %c0_58, %c0_59] : memref<1x32x64xf32, #tpu.memory_space<vmem>>, vector<1x32x64xf32>
    %123 = vector.shape_cast %122 : vector<1x32x64xf32> to vector<32x64xf32>
    %cst_60 = arith.constant dense<0.000000e+00> : vector<8x64xf32>
    %124 = tpu.matmul %121, %123, %cst_60 {dimension_numbers = #tpu.dot_dimension_numbers<[1], [0], [0], [1], [0, 0, 1, 1], [], []>} : vector<8x32xf32>, vector<32x64xf32>, vector<8x64xf32> -> vector<8x64xf32>
    %c0_61 = arith.constant 0 : index
    %c0_62 = arith.constant 0 : index
    %c0_63 = arith.constant 0 : index
    %125 = vector.load %arg16[%c0_61, %c0_62, %c0_63] : memref<1x1x64xf32, #tpu.memory_space<vmem>>, vector<1x1x64xf32>
    %126 = vector.shape_cast %125 : vector<1x1x64xf32> to vector<1x64xf32>
    %127 = vector.broadcast %126 : vector<1x64xf32> to vector<8x64xf32>
    %128 = arith.addf %124, %127 : vector<8x64xf32>
    %cst_64 = arith.constant 5.000000e-01 : f32
    %129 = vector.broadcast %cst_64 : f32 to vector<8x64xf32>
    %130 = arith.mulf %129, %128 : vector<8x64xf32>
    %cst_65 = arith.constant 0.707106769 : f32
    %131 = vector.broadcast %cst_65 : f32 to vector<8x64xf32>
    %132 = arith.mulf %128, %131 : vector<8x64xf32>
    %cst_66 = arith.constant 0.000000e+00 : f32
    %133 = vector.broadcast %cst_66 : f32 to vector<8x64xf32>
    %134 = arith.cmpf olt, %132, %133 : vector<8x64xf32>
    %cst_67 = arith.constant -1.000000e+00 : f32
    %cst_68 = arith.constant 1.000000e+00 : f32
    %135 = vector.broadcast %cst_67 : f32 to vector<8x64xf32>
    %136 = vector.broadcast %cst_68 : f32 to vector<8x64xf32>
    %137 = arith.select %134, %135, %136 : vector<8x64xi1>, vector<8x64xf32>
    %138 = math.absf %132 : vector<8x64xf32>
    %cst_69 = arith.constant 0.327591091 : f32
    %139 = vector.broadcast %cst_69 : f32 to vector<8x64xf32>
    %140 = arith.mulf %139, %138 : vector<8x64xf32>
    %cst_70 = arith.constant 1.000000e+00 : f32
    %141 = vector.broadcast %cst_70 : f32 to vector<8x64xf32>
    %142 = arith.addf %141, %140 : vector<8x64xf32>
    %cst_71 = arith.constant 1.000000e+00 : f32
    %143 = vector.broadcast %cst_71 : f32 to vector<8x64xf32>
    %144 = arith.divf %143, %142 : vector<8x64xf32>
    %cst_72 = arith.constant 1.06140542 : f32
    %145 = vector.broadcast %cst_72 : f32 to vector<8x64xf32>
    %146 = arith.mulf %145, %144 : vector<8x64xf32>
    %cst_73 = arith.constant -1.45315206 : f32
    %147 = vector.broadcast %cst_73 : f32 to vector<8x64xf32>
    %148 = arith.addf %146, %147 : vector<8x64xf32>
    %149 = arith.mulf %148, %144 : vector<8x64xf32>
    %cst_74 = arith.constant 1.42141378 : f32
    %150 = vector.broadcast %cst_74 : f32 to vector<8x64xf32>
    %151 = arith.addf %149, %150 : vector<8x64xf32>
    %152 = arith.mulf %151, %144 : vector<8x64xf32>
    %cst_75 = arith.constant -0.284496725 : f32
    %153 = vector.broadcast %cst_75 : f32 to vector<8x64xf32>
    %154 = arith.addf %152, %153 : vector<8x64xf32>
    %155 = arith.mulf %154, %144 : vector<8x64xf32>
    %cst_76 = arith.constant 0.254829586 : f32
    %156 = vector.broadcast %cst_76 : f32 to vector<8x64xf32>
    %157 = arith.addf %155, %156 : vector<8x64xf32>
    %158 = arith.mulf %157, %144 : vector<8x64xf32>
    %cst_77 = arith.constant 0.000000e+00 : f32
    %159 = vector.broadcast %cst_77 : f32 to vector<8x64xf32>
    %160 = arith.subf %159, %138 : vector<8x64xf32>
    %161 = arith.mulf %160, %138 : vector<8x64xf32>
    %162 = math.exp %161 : vector<8x64xf32>
    %163 = arith.mulf %158, %162 : vector<8x64xf32>
    %cst_78 = arith.constant 1.000000e+00 : f32
    %164 = vector.broadcast %cst_78 : f32 to vector<8x64xf32>
    %165 = arith.subf %164, %163 : vector<8x64xf32>
    %166 = arith.mulf %137, %165 : vector<8x64xf32>
    %cst_79 = arith.constant 1.000000e+00 : f32
    %167 = vector.broadcast %cst_79 : f32 to vector<8x64xf32>
    %168 = arith.addf %167, %166 : vector<8x64xf32>
    %169 = arith.mulf %130, %168 : vector<8x64xf32>
    %c0_80 = arith.constant 0 : index
    %c0_81 = arith.constant 0 : index
    %c0_82 = arith.constant 0 : index
    %170 = vector.load %arg17[%c0_80, %c0_81, %c0_82] : memref<1x64x32xf32, #tpu.memory_space<vmem>>, vector<1x64x32xf32>
    %171 = vector.shape_cast %170 : vector<1x64x32xf32> to vector<64x32xf32>
    %cst_83 = arith.constant dense<0.000000e+00> : vector<8x32xf32>
    %172 = tpu.matmul %169, %171, %cst_83 {dimension_numbers = #tpu.dot_dimension_numbers<[1], [0], [0], [1], [0, 0, 1, 1], [], []>} : vector<8x64xf32>, vector<64x32xf32>, vector<8x32xf32> -> vector<8x32xf32>
    %c0_84 = arith.constant 0 : index
    %c0_85 = arith.constant 0 : index
    %c0_86 = arith.constant 0 : index
    %173 = vector.load %arg18[%c0_84, %c0_85, %c0_86] : memref<1x1x32xf32, #tpu.memory_space<vmem>>, vector<1x1x32xf32>
    %174 = vector.shape_cast %173 : vector<1x1x32xf32> to vector<1x32xf32>
    %175 = vector.broadcast %174 : vector<1x32xf32> to vector<8x32xf32>
    %176 = arith.addf %172, %175 : vector<8x32xf32>
    %177 = arith.addf %176, %95 : vector<8x32xf32>
    %c0_87 = arith.constant 0 : index
    %c0_88 = arith.constant 0 : index
    %c0_89 = arith.constant 0 : index
    %178 = vector.load %arg19[%c0_87, %c0_88, %c0_89] : memref<1x8x32xf32, #tpu.memory_space<vmem>>, vector<1x8x32xf32>
    %179 = vector.shape_cast %178 : vector<1x8x32xf32> to vector<8x32xf32>
    %180 = vector.shape_cast %177 : vector<8x32xf32> to vector<1x8x32xf32>
    tpu.vector_store %arg19[%c0_87, %c0_88, %c0_89], %180 {strides = array<i32>} : memref<1x8x32xf32, #tpu.memory_space<vmem>>, vector<1x8x32xf32>,
    return
  }
  func.func @transform_0(%arg0: i32, %arg1: i32) -> (i32, i32, i32) {
    %c0_i32 = arith.constant 0 : i32
    %c0_i32_0 = arith.constant 0 : i32
    %c0_i32_1 = arith.constant 0 : i32
    return %arg0, %c0_i32, %c0_i32_0 : i32, i32, i32
  }
  func.func @transform_1(%arg0: i32, %arg1: i32) -> (i32, i32) {
    %c0_i32 = arith.constant 0 : i32
    %c0_i32_0 = arith.constant 0 : i32
    %c0_i32_1 = arith.constant 0 : i32
    return %c0_i32, %c0_i32_0 : i32, i32
  }
  func.func @transform_2(%arg0: i32, %arg1: i32) -> (i32, i32) {
    %c0_i32 = arith.constant 0 : i32
    %c0_i32_0 = arith.constant 0 : i32
    %c0_i32_1 = arith.constant 0 : i32
    return %c0_i32, %c0_i32_0 : i32, i32
  }
  func.func @transform_3(%arg0: i32, %arg1: i32) -> (i32, i32) {
    %c0_i32 = arith.constant 0 : i32
    %c0_i32_0 = arith.constant 0 : i32
    %c0_i32_1 = arith.constant 0 : i32
    return %c0_i32, %c0_i32_0 : i32, i32
  }
  func.func @transform_4(%arg0: i32, %arg1: i32) -> (i32, i32) {
    %c0_i32 = arith.constant 0 : i32
    %c0_i32_0 = arith.constant 0 : i32
    %c0_i32_1 = arith.constant 0 : i32
    return %c0_i32, %c0_i32_0 : i32, i32
  }
  func.func @transform_5(%arg0: i32, %arg1: i32) -> (i32, i32) {
    %c0_i32 = arith.constant 0 : i32
    %c0_i32_0 = arith.constant 0 : i32
    %c0_i32_1 = arith.constant 0 : i32
    return %c0_i32, %c0_i32_0 : i32, i32
  }
  func.func @transform_6(%arg0: i32, %arg1: i32) -> (i32, i32, i32) {
    %c0_i32 = arith.constant 0 : i32
    %c0_i32_0 = arith.constant 0 : i32
    %c0_i32_1 = arith.constant 0 : i32
    return %arg1, %c0_i32, %c0_i32_0 : i32, i32, i32
  }
  func.func @transform_7(%arg0: i32, %arg1: i32) -> (i32, i32, i32) {
    %c0_i32 = arith.constant 0 : i32
    %c0_i32_0 = arith.constant 0 : i32
    %c0_i32_1 = arith.constant 0 : i32
    return %arg1, %c0_i32, %c0_i32_0 : i32, i32, i32
  }
  func.func @transform_8(%arg0: i32, %arg1: i32) -> (i32, i32, i32) {
    %c0_i32 = arith.constant 0 : i32
    %c0_i32_0 = arith.constant 0 : i32
    %c0_i32_1 = arith.constant 0 : i32
    return %arg1, %c0_i32, %c0_i32_0 : i32, i32, i32
  }
  func.func @transform_9(%arg0: i32, %arg1: i32) -> (i32, i32, i32) {
    %c0_i32 = arith.constant 0 : i32
    %c0_i32_0 = arith.constant 0 : i32
    %c0_i32_1 = arith.constant 0 : i32
    return %arg1, %c0_i32, %c0_i32_0 : i32, i32, i32
  }
  func.func @transform_10(%arg0: i32, %arg1: i32) -> (i32, i32, i32) {
    %c0_i32 = arith.constant 0 : i32
    %c0_i32_0 = arith.constant 0 : i32
    %c0_i32_1 = arith.constant 0 : i32
    return %arg1, %c0_i32, %c0_i32_0 : i32, i32, i32
  }
  func.func @transform_11(%arg0: i32, %arg1: i32) -> (i32, i32, i32) {
    %c0_i32 = arith.constant 0 : i32
    %c0_i32_0 = arith.constant 0 : i32
    %c0_i32_1 = arith.constant 0 : i32
    return %arg1, %c0_i32, %c0_i32_0 : i32, i32, i32
  }
  func.func @transform_12(%arg0: i32, %arg1: i32) -> (i32, i32, i32) {
    %c0_i32 = arith.constant 0 : i32
    %c0_i32_0 = arith.constant 0 : i32
    %c0_i32_1 = arith.constant 0 : i32
    return %arg1, %c0_i32, %c0_i32_0 : i32, i32, i32
  }
  func.func @transform_13(%arg0: i32, %arg1: i32) -> (i32, i32, i32) {
    %c0_i32 = arith.constant 0 : i32
    %c0_i32_0 = arith.constant 0 : i32
    %c0_i32_1 = arith.constant 0 : i32
    return %arg1, %c0_i32, %c0_i32_0 : i32, i32, i32
  }
  func.func @transform_14(%arg0: i32, %arg1: i32) -> (i32, i32, i32) {
    %c0_i32 = arith.constant 0 : i32
    %c0_i32_0 = arith.constant 0 : i32
    %c0_i32_1 = arith.constant 0 : i32
    return %arg1, %c0_i32, %c0_i32_0 : i32, i32, i32
  }
  func.func @transform_15(%arg0: i32, %arg1: i32) -> (i32, i32, i32) {
    %c0_i32 = arith.constant 0 : i32
    %c0_i32_0 = arith.constant 0 : i32
    %c0_i32_1 = arith.constant 0 : i32
    return %arg1, %c0_i32, %c0_i32_0 : i32, i32, i32
  }
  func.func @transform_16(%arg0: i32, %arg1: i32) -> (i32, i32, i32) {
    %c0_i32 = arith.constant 0 : i32
    %c0_i32_0 = arith.constant 0 : i32
    %c0_i32_1 = arith.constant 0 : i32
    return %arg1, %c0_i32, %c0_i32_0 : i32, i32, i32
  }
  func.func @transform_17(%arg0: i32, %arg1: i32) -> (i32, i32, i32) {
    %c0_i32 = arith.constant 0 : i32
    %c0_i32_0 = arith.constant 0 : i32
    %c0_i32_1 = arith.constant 0 : i32
    return %arg0, %c0_i32, %c0_i32_0 : i32, i32, i32
  }
}

</mosaic_0001>

<llo_original>
// kernel: transformer_forward.1
$region0: #{transformer_forward.1}
  #allocation0 [shape = 'u32[]', space=smem, size = 0x4, offset = 0x4, fixed_abs, tag = 'smem constant byte address 0x4 - core index']
  #allocation1 [shape = 'u32[144,128]{1,0:T(1,128)}', space=vmem, size = 0x12000, scoped, tag = 'internal scratch']
  %s0 = inlined_call_operand.hbm [shape: f32[2,8,32], index: 0, kind: input, shape index: {}]
  %s1 = inlined_call_operand.hbm [shape: f32[1,32], index: 1, kind: input, shape index: {}]
  %s2 = inlined_call_operand.hbm [shape: f32[1,32], index: 2, kind: input, shape index: {}]
  %s3 = inlined_call_operand.vmem [shape: f32[32,4], index: 3, kind: input, shape index: {}]
  %s4 = inlined_call_operand.vmem [shape: f32[4,32], index: 4, kind: input, shape index: {}]
  %s5 = inlined_call_operand.vmem [shape: f32[8,32], index: 5, kind: input, shape index: {}]
  %s6 = inlined_call_operand.vmem [shape: f32[2,1,32], index: 6, kind: input, shape index: {}]
  %s7 = inlined_call_operand.vmem [shape: f32[2,1,32], index: 7, kind: input, shape index: {}]
  %s8 = inlined_call_operand.vmem [shape: f32[2,32,96], index: 8, kind: input, shape index: {}]
  %s9 = inlined_call_operand.vmem [shape: f32[2,32,32], index: 9, kind: input, shape index: {}]
  %s10 = inlined_call_operand.vmem [shape: f32[2,1,32], index: 10, kind: input, shape index: {}]
  %s11 = inlined_call_operand.hbm [shape: f32[2,1,32], index: 11, kind: input, shape index: {}]
  %s12 = inlined_call_operand.hbm [shape: f32[2,1,32], index: 12, kind: input, shape index: {}]
  %s13 = inlined_call_operand.vmem [shape: f32[2,32,64], index: 13, kind: input, shape index: {}]
  %s14 = inlined_call_operand.hbm [shape: f32[2,1,64], index: 14, kind: input, shape index: {}]
  %s15 = inlined_call_operand.vmem [shape: f32[2,64,32], index: 15, kind: input, shape index: {}]
  %s16 = inlined_call_operand.hbm [shape: f32[2,1,32], index: 16, kind: input, shape index: {}]
  %s17 = inlined_call_operand.hbm [shape: f32[2,8,32], index: 17, kind: output, shape index: {}]
  %s18 = sld [smem:[#allocation0]]
  $region133: #{transformer_forward.1} parent=0
    _
  %s20 = ssub.s32 1, %s18
  %s21 = scalar_select 0, %s20, %s18
  $region1: #{transformer_forward.1} parent=0
    #allocation2 [shape = 'u8[8192]{0}', space=vmem, size = 0x2000, scoped, tag = 'input window, operand 0']
    #allocation3 [shape = 's32[2]{0}', space=sflag, size = 0x8, scoped, tag = 'scoped memory for transformer_forward.1']
    #allocation4 [shape = 's32[2]{0}', space=sflag, size = 0x8, scoped, tag = 'scoped memory for transformer_forward.1']
    #allocation5 [shape = 'u8[512]{0}', space=vmem, size = 0x400, scoped, tag = 'input window, operand 1, single buffered']
    #allocation6 [shape = 's32[1]{0}', space=sflag, size = 0x4, scoped, tag = 'scoped memory for transformer_forward.1']
    #allocation7 [shape = 'u8[512]{0}', space=vmem, size = 0x400, scoped, tag = 'input window, operand 2, single buffered']
    #allocation8 [shape = 'u8[1024]{0}', space=vmem, size = 0x400, scoped, tag = 'input window, operand 11']
    #allocation9 [shape = 's32[2]{0}', space=sflag, size = 0x8, scoped, tag = 'scoped memory for transformer_forward.1']
    #allocation10 [shape = 'u8[1024]{0}', space=vmem, size = 0x400, scoped, tag = 'input window, operand 12']
    #allocation11 [shape = 'u8[1024]{0}', space=vmem, size = 0x400, scoped, tag = 'input window, operand 14']
    #allocation12 [shape = 's32[2]{0}', space=sflag, size = 0x8, scoped, tag = 'scoped memory for transformer_forward.1']
    #allocation13 [shape = 'u8[1024]{0}', space=vmem, size = 0x400, scoped, tag = 'input window, operand 16']
    #allocation14 [shape = 'u8[8192]{0}', space=vmem, size = 0x2000, scoped, tag = 'output window, operand 0']
    %22 = vsyncpa [#allocation3], 0
    %s23 = scalar_lea.sflag [#allocation3], 1
    %24 = vsyncpa %s23, 0
    %25 = vsyncpa [#allocation6], 0
    %26 = vsyncpa [#allocation9], 0
    %s27 = scalar_lea.sflag [#allocation9], 1
    %28 = vsyncpa %s27, 0
    %29 = vsyncpa [#allocation12], 0
    %s30 = scalar_lea.sflag [#allocation12], 1
    %31 = vsyncpa %s30, 0
    %32 = vsyncpa [#allocation4], 0
    %s33 = scalar_lea.sflag [#allocation4], 1
    %34 = vsyncpa %s33, 0
    loop: start=0, step=1, limit=6
    $region2: #{transformer_forward.1} parent=1 // loop_pre_header
      _
    $region3: #{transformer_forward.1} parent=1 // loop_header
      %s36 = sphi 0, %s40
      %p37 = scmp.ge.s32.totalorder %s36, 6
      %s43 = sphi 0, %s55
      %s44 = sphi 0, %s51
      %s45 = sphi 0, %s43
      %s46 = sphi 0, %s44
      %s47 = sphi 0, %s45
      %s48 = sphi 0, %s46
      %s58 = sphi 0, %s60
      %s61 = sphi 0, %s58
      %s62 = sphi 0, %s61
      %s78 = sphi 0, %s62
      %s82 = sphi 0, %s82
      %s84 = sphi 0, %s82
      %s85 = sphi 0, %s84
      %s99 = sphi 0, %s85
      %s103 = sphi 0, %s103
      %s105 = sphi 0, %s103
      %s106 = sphi 0, %s105
      %s120 = sphi 0, %s106
      %s124 = sphi 0, %s124
      %s126 = sphi 0, %s124
      %s127 = sphi 0, %s126
      %s141 = sphi 0, %s127
      %s145 = sphi 0, %s145
      %s147 = sphi 0, %s145
      %s148 = sphi 0, %s147
      %s162 = sphi 0, %s148
      %s166 = sphi 0, %s166
      %s168 = sphi 0, %s166
      %s169 = sphi 0, %s168
      %s183 = sphi 0, %s169
      %s189 = sphi 0, %s191
      %s192 = sphi 0, %s189
      %s193 = sphi 0, %s192
      %s209 = sphi 0, %s193
      %s215 = sphi 0, %s217
      %s218 = sphi 0, %s215
      %s219 = sphi 0, %s218
      %s235 = sphi 0, %s219
      %s241 = sphi 0, %s243
      %s244 = sphi 0, %s241
      %s245 = sphi 0, %s244
      %s261 = sphi 0, %s245
      %s267 = sphi 0, %s269
      %s270 = sphi 0, %s267
      %s271 = sphi 0, %s270
      %s287 = sphi 0, %s271
      %s293 = sphi 0, %s295
      %s296 = sphi 0, %s293
      %s297 = sphi 0, %s296
      %s313 = sphi 0, %s297
      %s319 = sphi 0, %s321
      %s322 = sphi 0, %s319
      %s323 = sphi 0, %s322
      %s339 = sphi 0, %s323
      %s345 = sphi 0, %s347
      %s348 = sphi 0, %s345
      %s349 = sphi 0, %s348
      %s365 = sphi 0, %s349
      %s371 = sphi 0, %s373
      %s374 = sphi 0, %s371
      %s375 = sphi 0, %s374
      %s391 = sphi 0, %s375
      %s397 = sphi 0, %s399
      %s400 = sphi 0, %s397
      %s401 = sphi 0, %s400
      %s417 = sphi 0, %s401
      %s423 = sphi 0, %s425
      %s426 = sphi 0, %s423
      %s427 = sphi 0, %s426
      %s443 = sphi 0, %s427
      %s449 = sphi 0, %s451
      %s452 = sphi 0, %s449
      %s453 = sphi 0, %s452
      %s469 = sphi 0, %s453
      %s475 = sphi 0, %s477
      %s478 = sphi 0, %s475
      %s479 = sphi 0, %s478
      %s495 = sphi 0, %s479
    $region4: #{transformer_forward.1} parent=1 // loop_header_branch
      %39 = sbr.rel (%p37) target = $region8
    $region5: #{transformer_forward.1} parent=1 // loop_body
      %s41 = ssub.s32 %s36, 1
      %s42 = ssub.s32 %s36, 2
      %s49 = sadd.s32 1, %s44
      %p50 = scmp.ge.s32.totalorder %s49, 2
      %s51 = scalar_select %p50, 0, %s49
      %s52 = sadd.s32 1, %s43
      %s53 = scalar_select %p50, %s52, %s43
      %p54 = scmp.ge.s32.totalorder %s53, 2
      %s55 = scalar_select %p54, 0, %s53
      %s56 = ssub.s32 %s43, %s55
      %p57 = scmp.eq.s32.totalorder %s56, 0
      %s59 = sadd.s32 %s58, 1
      %s60 = scalar_select %p57, %s58, %s59
      %p63 = pneg %p57
      %p64 = scmp.eq.s32.totalorder %s36, 3
      %p65 = por %p63, %p64
      %p66 = scmp.ne.s32.totalorder %s58, %s61
      %p67 = scmp.eq.s32.totalorder %s36, 0
      %p68 = por %p66, %p67
      %p69 = scmp.ne.s32.totalorder %s58, %s61
      %p70 = scmp.eq.s32.totalorder %s41, 3
      %p71 = por %p69, %p70
      %p72 = scmp.ne.s32.totalorder %s61, %s62
      %p73 = scmp.eq.s32.totalorder %s41, 0
      %p74 = por %p72, %p73
      %p75 = scmp.ne.s32.totalorder %s61, %s62
      %p76 = scmp.eq.s32.totalorder %s42, 3
      %p77 = por %p75, %p76
      %p79 = scmp.ne.s32.totalorder %s62, %s78
      %p80 = scmp.eq.s32.totalorder %s42, 0
      %p81 = por %p79, %p80
      %s83 = sadd.s32 %s82, 1
      %p86 = scmp.eq.s32.totalorder %s36, 3
      %p87 = scmp.ne.s32.totalorder %s82, %s84
      %p88 = scmp.eq.s32.totalorder %s36, 0
      %p89 = por %p87, %p88
      %p90 = scmp.ne.s32.totalorder %s82, %s84
      %p91 = scmp.eq.s32.totalorder %s41, 3
      %p92 = por %p90, %p91
      %p93 = scmp.ne.s32.totalorder %s84, %s85
      %p94 = scmp.eq.s32.totalorder %s41, 0
      %p95 = por %p93, %p94
      %p96 = scmp.ne.s32.totalorder %s84, %s85
      %p97 = scmp.eq.s32.totalorder %s42, 3
      %p98 = por %p96, %p97
      %p100 = scmp.ne.s32.totalorder %s85, %s99
      %p101 = scmp.eq.s32.totalorder %s42, 0
      %p102 = por %p100, %p101
      %s104 = sadd.s32 %s103, 1
      %p107 = scmp.eq.s32.totalorder %s36, 3
      %p108 = scmp.ne.s32.totalorder %s103, %s105
      %p109 = scmp.eq.s32.totalorder %s36, 0
      %p110 = por %p108, %p109
      %p111 = scmp.ne.s32.totalorder %s103, %s105
      %p112 = scmp.eq.s32.totalorder %s41, 3
      %p113 = por %p111, %p112
      %p114 = scmp.ne.s32.totalorder %s105, %s106
      %p115 = scmp.eq.s32.totalorder %s41, 0
      %p116 = por %p114, %p115
      %p117 = scmp.ne.s32.totalorder %s105, %s106
      %p118 = scmp.eq.s32.totalorder %s42, 3
      %p119 = por %p117, %p118
      %p121 = scmp.ne.s32.totalorder %s106, %s120
      %p122 = scmp.eq.s32.totalorder %s42, 0
      %p123 = por %p121, %p122
      %s125 = sadd.s32 %s124, 1
      %p128 = scmp.eq.s32.totalorder %s36, 3
      %p129 = scmp.ne.s32.totalorder %s124, %s126
      %p130 = scmp.eq.s32.totalorder %s36, 0
      %p131 = por %p129, %p130
      %p132 = scmp.ne.s32.totalorder %s124, %s126
      %p133 = scmp.eq.s32.totalorder %s41, 3
      %p134 = por %p132, %p133
      %p135 = scmp.ne.s32.totalorder %s126, %s127
      %p136 = scmp.eq.s32.totalorder %s41, 0
      %p137 = por %p135, %p136
      %p138 = scmp.ne.s32.totalorder %s126, %s127
      %p139 = scmp.eq.s32.totalorder %s42, 3
      %p140 = por %p138, %p139
      %p142 = scmp.ne.s32.totalorder %s127, %s141
      %p143 = scmp.eq.s32.totalorder %s42, 0
      %p144 = por %p142, %p143
      %s146 = sadd.s32 %s145, 1
      %p149 = scmp.eq.s32.totalorder %s36, 3
      %p150 = scmp.ne.s32.totalorder %s145, %s147
      %p151 = scmp.eq.s32.totalorder %s36, 0
      %p152 = por %p150, %p151
      %p153 = scmp.ne.s32.totalorder %s145, %s147
      %p154 = scmp.eq.s32.totalorder %s41, 3
      %p155 = por %p153, %p154
      %p156 = scmp.ne.s32.totalorder %s147, %s148
      %p157 = scmp.eq.s32.totalorder %s41, 0
      %p158 = por %p156, %p157
      %p159 = scmp.ne.s32.totalorder %s147, %s148
      %p160 = scmp.eq.s32.totalorder %s42, 3
      %p161 = por %p159, %p160
      %p163 = scmp.ne.s32.totalorder %s148, %s162
      %p164 = scmp.eq.s32.totalorder %s42, 0
      %p165 = por %p163, %p164
      %s167 = sadd.s32 %s166, 1
      %p170 = scmp.eq.s32.totalorder %s36, 3
      %p171 = scmp.ne.s32.totalorder %s166, %s168
      %p172 = scmp.eq.s32.totalorder %s36, 0
      %p173 = por %p171, %p172
      %p174 = scmp.ne.s32.totalorder %s166, %s168
      %p175 = scmp.eq.s32.totalorder %s41, 3
      %p176 = por %p174, %p175
      %p177 = scmp.ne.s32.totalorder %s168, %s169
      %p178 = scmp.eq.s32.totalorder %s41, 0
      %p179 = por %p177, %p178
      %p180 = scmp.ne.s32.totalorder %s168, %s169
      %p181 = scmp.eq.s32.totalorder %s42, 3
      %p182 = por %p180, %p181
      %p184 = scmp.ne.s32.totalorder %s169, %s183
      %p185 = scmp.eq.s32.totalorder %s42, 0
      %p186 = por %p184, %p185
      %s187 = ssub.s32 %s44, %s51
      %p188 = scmp.eq.s32.totalorder %s187, 0
      %s190 = sadd.s32 %s189, 1
      %s191 = scalar_select %p188, %s189, %s190
      %p194 = pneg %p188
      %p195 = scmp.eq.s32.totalorder %s36, 3
      %p196 = por %p194, %p195
      %p197 = scmp.ne.s32.totalorder %s189, %s192
      %p198 = scmp.eq.s32.totalorder %s36, 0
      %p199 = por %p197, %p198
      %p200 = scmp.ne.s32.totalorder %s189, %s192
      %p201 = scmp.eq.s32.totalorder %s41, 3
      %p202 = por %p200, %p201
      %p203 = scmp.ne.s32.totalorder %s192, %s193
      %p204 = scmp.eq.s32.totalorder %s41, 0
      %p205 = por %p203, %p204
      %p206 = scmp.ne.s32.totalorder %s192, %s193
      %p207 = scmp.eq.s32.totalorder %s42, 3
      %p208 = por %p206, %p207
      %p210 = scmp.ne.s32.totalorder %s193, %s209
      %p211 = scmp.eq.s32.totalorder %s42, 0
      %p212 = por %p210, %p211
      %s213 = ssub.s32 %s44, %s51
      %p214 = scmp.eq.s32.totalorder %s213, 0
      %s216 = sadd.s32 %s215, 1
      %s217 = scalar_select %p214, %s215, %s216
      %p220 = pneg %p214
      %p221 = scmp.eq.s32.totalorder %s36, 3
      %p222 = por %p220, %p221
      %p223 = scmp.ne.s32.totalorder %s215, %s218
      %p224 = scmp.eq.s32.totalorder %s36, 0
      %p225 = por %p223, %p224
      %p226 = scmp.ne.s32.totalorder %s215, %s218
      %p227 = scmp.eq.s32.totalorder %s41, 3
      %p228 = por %p226, %p227
      %p229 = scmp.ne.s32.totalorder %s218, %s219
      %p230 = scmp.eq.s32.totalorder %s41, 0
      %p231 = por %p229, %p230
      %p232 = scmp.ne.s32.totalorder %s218, %s219
      %p233 = scmp.eq.s32.totalorder %s42, 3
      %p234 = por %p232, %p233
      %p236 = scmp.ne.s32.totalorder %s219, %s235
      %p237 = scmp.eq.s32.totalorder %s42, 0
      %p238 = por %p236, %p237
      %s239 = ssub.s32 %s44, %s51
      %p240 = scmp.eq.s32.totalorder %s239, 0
      %s242 = sadd.s32 %s241, 1
      %s243 = scalar_select %p240, %s241, %s242
      %p246 = pneg %p240
      %p247 = scmp.eq.s32.totalorder %s36, 3
      %p248 = por %p246, %p247
      %p249 = scmp.ne.s32.totalorder %s241, %s244
      %p250 = scmp.eq.s32.totalorder %s36, 0
      %p251 = por %p249, %p250
      %p252 = scmp.ne.s32.totalorder %s241, %s244
      %p253 = scmp.eq.s32.totalorder %s41, 3
      %p254 = por %p252, %p253
      %p255 = scmp.ne.s32.totalorder %s244, %s245
      %p256 = scmp.eq.s32.totalorder %s41, 0
      %p257 = por %p255, %p256
      %p258 = scmp.ne.s32.totalorder %s244, %s245
      %p259 = scmp.eq.s32.totalorder %s42, 3
      %p260 = por %p258, %p259
      %p262 = scmp.ne.s32.totalorder %s245, %s261
      %p263 = scmp.eq.s32.totalorder %s42, 0
      %p264 = por %p262, %p263
      %s265 = ssub.s32 %s44, %s51
      %p266 = scmp.eq.s32.totalorder %s265, 0
      %s268 = sadd.s32 %s267, 1
      %s269 = scalar_select %p266, %s267, %s268
      %p272 = pneg %p266
      %p273 = scmp.eq.s32.totalorder %s36, 3
      %p274 = por %p272, %p273
      %p275 = scmp.ne.s32.totalorder %s267, %s270
      %p276 = scmp.eq.s32.totalorder %s36, 0
      %p277 = por %p275, %p276
      %p278 = scmp.ne.s32.totalorder %s267, %s270
      %p279 = scmp.eq.s32.totalorder %s41, 3
      %p280 = por %p278, %p279
      %p281 = scmp.ne.s32.totalorder %s270, %s271
      %p282 = scmp.eq.s32.totalorder %s41, 0
      %p283 = por %p281, %p282
      %p284 = scmp.ne.s32.totalorder %s270, %s271
      %p285 = scmp.eq.s32.totalorder %s42, 3
      %p286 = por %p284, %p285
      %p288 = scmp.ne.s32.totalorder %s271, %s287
      %p289 = scmp.eq.s32.totalorder %s42, 0
      %p290 = por %p288, %p289
      %s291 = ssub.s32 %s44, %s51
      %p292 = scmp.eq.s32.totalorder %s291, 0
      %s294 = sadd.s32 %s293, 1
      %s295 = scalar_select %p292, %s293, %s294
      %p298 = pneg %p292
      %p299 = scmp.eq.s32.totalorder %s36, 3
      %p300 = por %p298, %p299
      %p301 = scmp.ne.s32.totalorder %s293, %s296
      %p302 = scmp.eq.s32.totalorder %s36, 0
      %p303 = por %p301, %p302
      %p304 = scmp.ne.s32.totalorder %s293, %s296
      %p305 = scmp.eq.s32.totalorder %s41, 3
      %p306 = por %p304, %p305
      %p307 = scmp.ne.s32.totalorder %s296, %s297
      %p308 = scmp.eq.s32.totalorder %s41, 0
      %p309 = por %p307, %p308
      %p310 = scmp.ne.s32.totalorder %s296, %s297
      %p311 = scmp.eq.s32.totalorder %s42, 3
      %p312 = por %p310, %p311
      %p314 = scmp.ne.s32.totalorder %s297, %s313
      %p315 = scmp.eq.s32.totalorder %s42, 0
      %p316 = por %p314, %p315
      %s317 = ssub.s32 %s44, %s51
      %p318 = scmp.eq.s32.totalorder %s317, 0
      %s320 = sadd.s32 %s319, 1
      %s321 = scalar_select %p318, %s319, %s320
      %p324 = pneg %p318
      %p325 = scmp.eq.s32.totalorder %s36, 3
      %p326 = por %p324, %p325
      %p327 = scmp.ne.s32.totalorder %s319, %s322
      %p328 = scmp.eq.s32.totalorder %s36, 0
      %p329 = por %p327, %p328
      %p330 = scmp.ne.s32.totalorder %s319, %s322
      %p331 = scmp.eq.s32.totalorder %s41, 3
      %p332 = por %p330, %p331
      %p333 = scmp.ne.s32.totalorder %s322, %s323
      %p334 = scmp.eq.s32.totalorder %s41, 0
      %p335 = por %p333, %p334
      %p336 = scmp.ne.s32.totalorder %s322, %s323
      %p337 = scmp.eq.s32.totalorder %s42, 3
      %p338 = por %p336, %p337
      %p340 = scmp.ne.s32.totalorder %s323, %s339
      %p341 = scmp.eq.s32.totalorder %s42, 0
      %p342 = por %p340, %p341
      %s343 = ssub.s32 %s44, %s51
      %p344 = scmp.eq.s32.totalorder %s343, 0
      %s346 = sadd.s32 %s345, 1
      %s347 = scalar_select %p344, %s345, %s346
      %p350 = pneg %p344
      %p351 = scmp.eq.s32.totalorder %s36, 3
      %p352 = por %p350, %p351
      %p353 = scmp.ne.s32.totalorder %s345, %s348
      %p354 = scmp.eq.s32.totalorder %s36, 0
      %p355 = por %p353, %p354
      %p356 = scmp.ne.s32.totalorder %s345, %s348
      %p357 = scmp.eq.s32.totalorder %s41, 3
      %p358 = por %p356, %p357
      %p359 = scmp.ne.s32.totalorder %s348, %s349
      %p360 = scmp.eq.s32.totalorder %s41, 0
      %p361 = por %p359, %p360
      %p362 = scmp.ne.s32.totalorder %s348, %s349
      %p363 = scmp.eq.s32.totalorder %s42, 3
      %p364 = por %p362, %p363
      %p366 = scmp.ne.s32.totalorder %s349, %s365
      %p367 = scmp.eq.s32.totalorder %s42, 0
      %p368 = por %p366, %p367
      %s369 = ssub.s32 %s44, %s51
      %p370 = scmp.eq.s32.totalorder %s369, 0
      %s372 = sadd.s32 %s371, 1
      %s373 = scalar_select %p370, %s371, %s372
      %p376 = pneg %p370
      %p377 = scmp.eq.s32.totalorder %s36, 3
      %p378 = por %p376, %p377
      %p379 = scmp.ne.s32.totalorder %s371, %s374
      %p380 = scmp.eq.s32.totalorder %s36, 0
      %p381 = por %p379, %p380
      %p382 = scmp.ne.s32.totalorder %s371, %s374
      %p383 = scmp.eq.s32.totalorder %s41, 3
      %p384 = por %p382, %p383
      %p385 = scmp.ne.s32.totalorder %s374, %s375
      %p386 = scmp.eq.s32.totalorder %s41, 0
      %p387 = por %p385, %p386
      %p388 = scmp.ne.s32.totalorder %s374, %s375
      %p389 = scmp.eq.s32.totalorder %s42, 3
      %p390 = por %p388, %p389
      %p392 = scmp.ne.s32.totalorder %s375, %s391
      %p393 = scmp.eq.s32.totalorder %s42, 0
      %p394 = por %p392, %p393
      %s395 = ssub.s32 %s44, %s51
      %p396 = scmp.eq.s32.totalorder %s395, 0
      %s398 = sadd.s32 %s397, 1
      %s399 = scalar_select %p396, %s397, %s398
      %p402 = pneg %p396
      %p403 = scmp.eq.s32.totalorder %s36, 3
      %p404 = por %p402, %p403
      %p405 = scmp.ne.s32.totalorder %s397, %s400
      %p406 = scmp.eq.s32.totalorder %s36, 0
      %p407 = por %p405, %p406
      %p408 = scmp.ne.s32.totalorder %s397, %s400
      %p409 = scmp.eq.s32.totalorder %s41, 3
      %p410 = por %p408, %p409
      %p411 = scmp.ne.s32.totalorder %s400, %s401
      %p412 = scmp.eq.s32.totalorder %s41, 0
      %p413 = por %p411, %p412
      %p414 = scmp.ne.s32.totalorder %s400, %s401
      %p415 = scmp.eq.s32.totalorder %s42, 3
      %p416 = por %p414, %p415
      %p418 = scmp.ne.s32.totalorder %s401, %s417
      %p419 = scmp.eq.s32.totalorder %s42, 0
      %p420 = por %p418, %p419
      %s421 = ssub.s32 %s44, %s51
      %p422 = scmp.eq.s32.totalorder %s421, 0
      %s424 = sadd.s32 %s423, 1
      %s425 = scalar_select %p422, %s423, %s424
      %p428 = pneg %p422
      %p429 = scmp.eq.s32.totalorder %s36, 3
      %p430 = por %p428, %p429
      %p431 = scmp.ne.s32.totalorder %s423, %s426
      %p432 = scmp.eq.s32.totalorder %s36, 0
      %p433 = por %p431, %p432
      %p434 = scmp.ne.s32.totalorder %s423, %s426
      %p435 = scmp.eq.s32.totalorder %s41, 3
      %p436 = por %p434, %p435
      %p437 = scmp.ne.s32.totalorder %s426, %s427
      %p438 = scmp.eq.s32.totalorder %s41, 0
      %p439 = por %p437, %p438
      %p440 = scmp.ne.s32.totalorder %s426, %s427
      %p441 = scmp.eq.s32.totalorder %s42, 3
      %p442 = por %p440, %p441
      %p444 = scmp.ne.s32.totalorder %s427, %s443
      %p445 = scmp.eq.s32.totalorder %s42, 0
      %p446 = por %p444, %p445
      %s447 = ssub.s32 %s44, %s51
      %p448 = scmp.eq.s32.totalorder %s447, 0
      %s450 = sadd.s32 %s449, 1
      %s451 = scalar_select %p448, %s449, %s450
      %p454 = pneg %p448
      %p455 = scmp.eq.s32.totalorder %s36, 3
      %p456 = por %p454, %p455
      %p457 = scmp.ne.s32.totalorder %s449, %s452
      %p458 = scmp.eq.s32.totalorder %s36, 0
      %p459 = por %p457, %p458
      %p460 = scmp.ne.s32.totalorder %s449, %s452
      %p461 = scmp.eq.s32.totalorder %s41, 3
      %p462 = por %p460, %p461
      %p463 = scmp.ne.s32.totalorder %s452, %s453
      %p464 = scmp.eq.s32.totalorder %s41, 0
      %p465 = por %p463, %p464
      %p466 = scmp.ne.s32.totalorder %s452, %s453
      %p467 = scmp.eq.s32.totalorder %s42, 3
      %p468 = por %p466, %p467
      %p470 = scmp.ne.s32.totalorder %s453, %s469
      %p471 = scmp.eq.s32.totalorder %s42, 0
      %p472 = por %p470, %p471
      %s473 = ssub.s32 %s43, %s55
      %p474 = scmp.eq.s32.totalorder %s473, 0
      %s476 = sadd.s32 %s475, 1
      %s477 = scalar_select %p474, %s475, %s476
      %p480 = pneg %p474
      %p481 = scmp.eq.s32.totalorder %s36, 3
      %p482 = por %p480, %p481
      %p483 = scmp.ne.s32.totalorder %s475, %s478
      %p484 = scmp.eq.s32.totalorder %s36, 0
      %p485 = por %p483, %p484
      %p486 = scmp.ne.s32.totalorder %s475, %s478
      %p487 = scmp.eq.s32.totalorder %s41, 3
      %p488 = por %p486, %p487
      %p489 = scmp.ne.s32.totalorder %s478, %s479
      %p490 = scmp.eq.s32.totalorder %s41, 0
      %p491 = por %p489, %p490
      %p492 = scmp.ne.s32.totalorder %s478, %s479
      %p493 = scmp.eq.s32.totalorder %s42, 3
      %p494 = por %p492, %p493
      %p496 = scmp.ne.s32.totalorder %s479, %s495
      %p497 = scmp.eq.s32.totalorder %s42, 0
      %p498 = por %p496, %p497
      %p499 = scmp.le.s32.totalorder 1, %s36
      %p500 = scmp.lt.s32.totalorder %s36, 5
      %p501 = pnand %p499, %p500
      %p502 = pneg %p501
      // Predicated region
      $region9: #{transformer_forward.1} parent=5 // pred_check
        _
      $region10: #{transformer_forward.1} parent=5 // pred_check_branch
        %504 = sbr.rel (%p501) target = $region12
      $region11: #{transformer_forward.1} parent=5 // pred_region
        %s505 = ssub.s32 %s36, 1
        // Predicated region
        $region13: #{transformer_forward.1} parent=11 // pred_check
          %p506 = pneg %p95
        $region14: #{transformer_forward.1} parent=11 // pred_check_branch
          %508 = sbr.rel (%p506) target = $region16
        $region15: #{transformer_forward.1} parent=11 // pred_region
          %s510 = ssub.s32 16, 16
          %511 = vsyncadd [#allocation6], %s510
          %s513 = sshll.u32 [#allocation5], 4
          %s514 = int_to_ptr.vmem [resolvable:$true] %s513
          %516 = dma.hbm_to_vmem [thread:$0]  %s1, 16, %s514, [#allocation6]
        $region16: #{transformer_forward.1} parent=11 // pred_fallthru
          _
        // Predicated region
        $region17: #{transformer_forward.1} parent=11 // pred_check
          %p517 = pneg %p116
        $region18: #{transformer_forward.1} parent=11 // pred_check_branch
          %519 = sbr.rel (%p517) target = $region20
        $region19: #{transformer_forward.1} parent=11 // pred_region
          %s521 = ssub.s32 16, 16
          %522 = vsyncadd [#allocation6], %s521
          %s524 = sshll.u32 [#allocation7], 4
          %s525 = int_to_ptr.vmem [resolvable:$true] %s524
          %527 = dma.hbm_to_vmem [thread:$0]  %s2, 16, %s525, [#allocation6]
        $region20: #{transformer_forward.1} parent=11 // pred_fallthru
          _
        // Predicated region
        $region21: #{transformer_forward.1} parent=11 // pred_check
          %p528 = pneg %p137
        $region22: #{transformer_forward.1} parent=11 // pred_check_branch
          %530 = sbr.rel (%p528) target = $region24
        $region23: #{transformer_forward.1} parent=11 // pred_region
          _
        $region24: #{transformer_forward.1} parent=11 // pred_fallthru
          _
        // Predicated region
        $region25: #{transformer_forward.1} parent=11 // pred_check
          %p531 = pneg %p158
        $region26: #{transformer_forward.1} parent=11 // pred_check_branch
          %533 = sbr.rel (%p531) target = $region28
        $region27: #{transformer_forward.1} parent=11 // pred_region
          _
        $region28: #{transformer_forward.1} parent=11 // pred_fallthru
          _
        // Predicated region
        $region29: #{transformer_forward.1} parent=11 // pred_check
          %p534 = pneg %p179
        $region30: #{transformer_forward.1} parent=11 // pred_check_branch
          %536 = sbr.rel (%p534) target = $region32
        $region31: #{transformer_forward.1} parent=11 // pred_region
          _
        $region32: #{transformer_forward.1} parent=11 // pred_fallthru
          _
      $region12: #{transformer_forward.1} parent=5 // pred_fallthru
        _
      %p537 = scmp.lt.s32.totalorder %s36, 4
      // Predicated region
      $region33: #{transformer_forward.1} parent=5 // pred_check
        %p538 = pneg %p537
      $region34: #{transformer_forward.1} parent=5 // pred_check_branch
        %540 = sbr.rel (%p538) target = $region36
      $region35: #{transformer_forward.1} parent=5 // pred_region
        // Predicated region
        $region37: #{transformer_forward.1} parent=35 // pred_check
          %p541 = pneg %p68
        $region38: #{transformer_forward.1} parent=35 // pred_check_branch
          %543 = sbr.rel (%p541) target = $region40
        $region39: #{transformer_forward.1} parent=35 // pred_region
          %s544 = sand.u32 %s58, 1
          %s545 = scalar_lea.sflag [#allocation3], %s544
          %s546 = sand.u32 %s58, 1
          %s547 = smul.addr %s546, 8
          %s548 = scalar_lea.vmem [#allocation2], %s547
          %s550 = ssub.s32 128, 128
          %551 = vsyncadd %s545, %s550
          %s552 = smul.addr %s43, 128
          %s553 = scalar_lea.hbm %s0, %s552
          %s555 = sshll.u32 %s548, 4
          %s556 = int_to_ptr.vmem [resolvable:$true] %s555
          %558 = dma.hbm_to_vmem [thread:$0]  %s553, 128, %s556, %s545
        $region40: #{transformer_forward.1} parent=35 // pred_fallthru
          _
        // Predicated region
        $region41: #{transformer_forward.1} parent=35 // pred_check
          %p559 = pneg %p199
        $region42: #{transformer_forward.1} parent=35 // pred_check_branch
          %561 = sbr.rel (%p559) target = $region44
        $region43: #{transformer_forward.1} parent=35 // pred_region
          %p562 = scmp.lt.s32.totalorder %s44, 1
          %s563 = scalar_select %p562, %s44, 1
          %s564 = scalar_lea.vmem %s6, %s563
        $region44: #{transformer_forward.1} parent=35 // pred_fallthru
          _
        // Predicated region
        $region45: #{transformer_forward.1} parent=35 // pred_check
          %p565 = pneg %p225
        $region46: #{transformer_forward.1} parent=35 // pred_check_branch
          %567 = sbr.rel (%p565) target = $region48
        $region47: #{transformer_forward.1} parent=35 // pred_region
          %p568 = scmp.lt.s32.totalorder %s44, 1
          %s569 = scalar_select %p568, %s44, 1
          %s570 = scalar_lea.vmem %s7, %s569
        $region48: #{transformer_forward.1} parent=35 // pred_fallthru
          _
        // Predicated region
        $region49: #{transformer_forward.1} parent=35 // pred_check
          %p571 = pneg %p251
        $region50: #{transformer_forward.1} parent=35 // pred_check_branch
          %573 = sbr.rel (%p571) target = $region52
        $region51: #{transformer_forward.1} parent=35 // pred_region
          %p574 = scmp.lt.s32.totalorder %s44, 1
          %s575 = scalar_select %p574, %s44, 1
          %s576 = smul.addr %s575, 4
          %s577 = smul.addr %s576, 8
          %s578 = scalar_lea.vmem %s8, %s577
        $region52: #{transformer_forward.1} parent=35 // pred_fallthru
          _
        // Predicated region
        $region53: #{transformer_forward.1} parent=35 // pred_check
          %p579 = pneg %p277
        $region54: #{transformer_forward.1} parent=35 // pred_check_branch
          %581 = sbr.rel (%p579) target = $region56
        $region55: #{transformer_forward.1} parent=35 // pred_region
          %p582 = scmp.lt.s32.totalorder %s44, 1
          %s583 = scalar_select %p582, %s44, 1
          %s584 = smul.addr %s583, 4
          %s585 = smul.addr %s584, 8
          %s586 = scalar_lea.vmem %s9, %s585
        $region56: #{transformer_forward.1} parent=35 // pred_fallthru
          _
        // Predicated region
        $region57: #{transformer_forward.1} parent=35 // pred_check
          %p587 = pneg %p303
        $region58: #{transformer_forward.1} parent=35 // pred_check_branch
          %589 = sbr.rel (%p587) target = $region60
        $region59: #{transformer_forward.1} parent=35 // pred_region
          %p590 = scmp.lt.s32.totalorder %s44, 1
          %s591 = scalar_select %p590, %s44, 1
          %s592 = scalar_lea.vmem %s10, %s591
        $region60: #{transformer_forward.1} parent=35 // pred_fallthru
          _
        // Predicated region
        $region61: #{transformer_forward.1} parent=35 // pred_check
          %p593 = pneg %p329
        $region62: #{transformer_forward.1} parent=35 // pred_check_branch
          %595 = sbr.rel (%p593) target = $region64
        $region63: #{transformer_forward.1} parent=35 // pred_region
          %s596 = sand.u32 %s36, 1
          %s597 = scalar_lea.sflag [#allocation9], %s596
          %s598 = sand.u32 %s319, 1
          %s599 = scalar_lea.vmem [#allocation8], %s598
          %s601 = ssub.s32 16, 16
          %602 = vsyncadd %s597, %s601
          %s603 = smul.addr %s44, 16
          %s604 = scalar_lea.hbm %s11, %s603
          %s606 = sshll.u32 %s599, 4
          %s607 = int_to_ptr.vmem [resolvable:$true] %s606
          %609 = dma.hbm_to_vmem [thread:$0]  %s604, 16, %s607, %s597
        $region64: #{transformer_forward.1} parent=35 // pred_fallthru
          _
        // Predicated region
        $region65: #{transformer_forward.1} parent=35 // pred_check
          %p610 = pneg %p355
        $region66: #{transformer_forward.1} parent=35 // pred_check_branch
          %612 = sbr.rel (%p610) target = $region68
        $region67: #{transformer_forward.1} parent=35 // pred_region
          %s613 = sand.u32 %s36, 1
          %s614 = scalar_lea.sflag [#allocation9], %s613
          %s615 = sand.u32 %s345, 1
          %s616 = scalar_lea.vmem [#allocation10], %s615
          %s618 = ssub.s32 16, 16
          %619 = vsyncadd %s614, %s618
          %s620 = smul.addr %s44, 16
          %s621 = scalar_lea.hbm %s12, %s620
          %s623 = sshll.u32 %s616, 4
          %s624 = int_to_ptr.vmem [resolvable:$true] %s623
          %626 = dma.hbm_to_vmem [thread:$0]  %s621, 16, %s624, %s614
        $region68: #{transformer_forward.1} parent=35 // pred_fallthru
          _
        // Predicated region
        $region69: #{transformer_forward.1} parent=35 // pred_check
          %p627 = pneg %p381
        $region70: #{transformer_forward.1} parent=35 // pred_check_branch
          %629 = sbr.rel (%p627) target = $region72
        $region71: #{transformer_forward.1} parent=35 // pred_region
          %p630 = scmp.lt.s32.totalorder %s44, 1
          %s631 = scalar_select %p630, %s44, 1
          %s632 = smul.addr %s631, 4
          %s633 = smul.addr %s632, 8
          %s634 = scalar_lea.vmem %s13, %s633
        $region72: #{transformer_forward.1} parent=35 // pred_fallthru
          _
        // Predicated region
        $region73: #{transformer_forward.1} parent=35 // pred_check
          %p635 = pneg %p407
        $region74: #{transformer_forward.1} parent=35 // pred_check_branch
          %637 = sbr.rel (%p635) target = $region76
        $region75: #{transformer_forward.1} parent=35 // pred_region
          %s638 = sand.u32 %s36, 1
          %s639 = scalar_lea.sflag [#allocation12], %s638
          %s640 = sand.u32 %s397, 1
          %s641 = scalar_lea.vmem [#allocation11], %s640
          %s643 = ssub.s32 16, 16
          %644 = vsyncadd %s639, %s643
          %s645 = smul.addr %s44, 16
          %s646 = scalar_lea.hbm %s14, %s645
          %s648 = sshll.u32 %s641, 4
          %s649 = int_to_ptr.vmem [resolvable:$true] %s648
          %651 = dma.hbm_to_vmem [thread:$0]  %s646, 16, %s649, %s639
        $region76: #{transformer_forward.1} parent=35 // pred_fallthru
          _
        // Predicated region
        $region77: #{transformer_forward.1} parent=35 // pred_check
          %p652 = pneg %p433
        $region78: #{transformer_forward.1} parent=35 // pred_check_branch
          %654 = sbr.rel (%p652) target = $region80
        $region79: #{transformer_forward.1} parent=35 // pred_region
          %p655 = scmp.lt.s32.totalorder %s44, 1
          %s656 = scalar_select %p655, %s44, 1
          %s657 = smul.addr %s656, 8
          %s658 = smul.addr %s657, 8
          %s659 = scalar_lea.vmem %s15, %s658
        $region80: #{transformer_forward.1} parent=35 // pred_fallthru
          _
        // Predicated region
        $region81: #{transformer_forward.1} parent=35 // pred_check
          %p660 = pneg %p459
        $region82: #{transformer_forward.1} parent=35 // pred_check_branch
          %662 = sbr.rel (%p660) target = $region84
        $region83: #{transformer_forward.1} parent=35 // pred_region
          %s663 = sand.u32 %s36, 1
          %s664 = scalar_lea.sflag [#allocation12], %s663
          %s665 = sand.u32 %s449, 1
          %s666 = scalar_lea.vmem [#allocation13], %s665
          %s668 = ssub.s32 16, 16
          %669 = vsyncadd %s664, %s668
          %s670 = smul.addr %s44, 16
          %s671 = scalar_lea.hbm %s16, %s670
          %s673 = sshll.u32 %s666, 4
          %s674 = int_to_ptr.vmem [resolvable:$true] %s673
          %676 = dma.hbm_to_vmem [thread:$0]  %s671, 16, %s674, %s664
        $region84: #{transformer_forward.1} parent=35 // pred_fallthru
          _
      $region36: #{transformer_forward.1} parent=5 // pred_fallthru
        _
      %p677 = scmp.le.s32.totalorder 1, %s36
      %p678 = scmp.lt.s32.totalorder %s36, 5
      %p679 = pnand %p677, %p678
      %p680 = pneg %p679
      // Predicated region
      $region85: #{transformer_forward.1} parent=5 // pred_check
        _
      $region86: #{transformer_forward.1} parent=5 // pred_check_branch
        %682 = sbr.rel (%p679) target = $region88
      $region87: #{transformer_forward.1} parent=5 // pred_region
        %s683 = ssub.s32 %s36, 1
        %s684 = sand.u32 %s61, 1
        %s685 = scalar_lea.sflag [#allocation3], %s684
        %s686 = sand.u32 %s61, 1
        %s687 = smul.addr %s686, 8
        %s688 = scalar_lea.vmem [#allocation2], %s687
        // Predicated region
        $region89: #{transformer_forward.1} parent=87 // pred_check
          %p689 = pneg %p74
        $region90: #{transformer_forward.1} parent=87 // pred_check_branch
          %691 = sbr.rel (%p689) target = $region92
        $region91: #{transformer_forward.1} parent=87 // pred_region
          %692 = dma.done %s685, 128
        $region92: #{transformer_forward.1} parent=87 // pred_fallthru
          _
        // Predicated region
        $region93: #{transformer_forward.1} parent=87 // pred_check
          %p693 = pneg %p95
        $region94: #{transformer_forward.1} parent=87 // pred_check_branch
          %695 = sbr.rel (%p693) target = $region96
        $region95: #{transformer_forward.1} parent=87 // pred_region
          %696 = dma.done [#allocation6], 16
        $region96: #{transformer_forward.1} parent=87 // pred_fallthru
          _
        // Predicated region
        $region97: #{transformer_forward.1} parent=87 // pred_check
          %p697 = pneg %p116
        $region98: #{transformer_forward.1} parent=87 // pred_check_branch
          %699 = sbr.rel (%p697) target = $region100
        $region99: #{transformer_forward.1} parent=87 // pred_region
          %700 = dma.done [#allocation6], 16
        $region100: #{transformer_forward.1} parent=87 // pred_fallthru
          _
        %s701 = sand.u32 %s41, 1
        %s702 = scalar_lea.sflag [#allocation9], %s701
        %s703 = sand.u32 %s322, 1
        %s704 = scalar_lea.vmem [#allocation8], %s703
        // Predicated region
        $region101: #{transformer_forward.1} parent=87 // pred_check
          %p705 = pneg %p335
        $region102: #{transformer_forward.1} parent=87 // pred_check_branch
          %707 = sbr.rel (%p705) target = $region104
        $region103: #{transformer_forward.1} parent=87 // pred_region
          %708 = dma.done %s702, 16
        $region104: #{transformer_forward.1} parent=87 // pred_fallthru
          _
        %s709 = sand.u32 %s41, 1
        %s710 = scalar_lea.sflag [#allocation9], %s709
        %s711 = sand.u32 %s348, 1
        %s712 = scalar_lea.vmem [#allocation10], %s711
        // Predicated region
        $region105: #{transformer_forward.1} parent=87 // pred_check
          %p713 = pneg %p361
        $region106: #{transformer_forward.1} parent=87 // pred_check_branch
          %715 = sbr.rel (%p713) target = $region108
        $region107: #{transformer_forward.1} parent=87 // pred_region
          %716 = dma.done %s710, 16
        $region108: #{transformer_forward.1} parent=87 // pred_fallthru
          _
        %s717 = sand.u32 %s41, 1
        %s718 = scalar_lea.sflag [#allocation12], %s717
        %s719 = sand.u32 %s400, 1
        %s720 = scalar_lea.vmem [#allocation11], %s719
        // Predicated region
        $region109: #{transformer_forward.1} parent=87 // pred_check
          %p721 = pneg %p413
        $region110: #{transformer_forward.1} parent=87 // pred_check_branch
          %723 = sbr.rel (%p721) target = $region112
        $region111: #{transformer_forward.1} parent=87 // pred_region
          %724 = dma.done %s718, 16
        $region112: #{transformer_forward.1} parent=87 // pred_fallthru
          _
        %s725 = sand.u32 %s41, 1
        %s726 = scalar_lea.sflag [#allocation12], %s725
        %s727 = sand.u32 %s452, 1
        %s728 = scalar_lea.vmem [#allocation13], %s727
        // Predicated region
        $region113: #{transformer_forward.1} parent=87 // pred_check
          %p729 = pneg %p465
        $region114: #{transformer_forward.1} parent=87 // pred_check_branch
          %731 = sbr.rel (%p729) target = $region116
        $region115: #{transformer_forward.1} parent=87 // pred_region
          %732 = dma.done %s726, 16
        $region116: #{transformer_forward.1} parent=87 // pred_fallthru
          _
        %s733 = sand.u32 %s61, 1
        %s734 = scalar_lea.sflag [#allocation3], %s733
        %s735 = sand.u32 %s61, 1
        %s736 = smul.addr %s735, 8
        %s737 = scalar_lea.vmem [#allocation2], %s736
        %p738 = pneg %p74
        %p739 = pneg %p71
        %p740 = pneg %p95
        %p741 = pneg %p92
        %p742 = pneg %p116
        %p743 = pneg %p113
        %p744 = pneg %p137
        %p745 = pneg %p134
        %p746 = pneg %p158
        %p747 = pneg %p155
        %p748 = pneg %p179
        %p749 = pneg %p176
        %p750 = scmp.lt.s32.totalorder %s46, 1
        %s751 = scalar_select %p750, %s46, 1
        %s752 = scalar_lea.vmem %s6, %s751
        %p753 = pneg %p205
        %p754 = pneg %p202
        %p755 = scmp.lt.s32.totalorder %s46, 1
        %s756 = scalar_select %p755, %s46, 1
        %s757 = scalar_lea.vmem %s7, %s756
        %p758 = pneg %p231
        %p759 = pneg %p228
        %p760 = scmp.lt.s32.totalorder %s46, 1
        %s761 = scalar_select %p760, %s46, 1
        %s762 = smul.addr %s761, 4
        %s763 = smul.addr %s762, 8
        %s764 = scalar_lea.vmem %s8, %s763
        %p765 = pneg %p257
        %p766 = pneg %p254
        %p767 = scmp.lt.s32.totalorder %s46, 1
        %s768 = scalar_select %p767, %s46, 1
        %s769 = smul.addr %s768, 4
        %s770 = smul.addr %s769, 8
        %s771 = scalar_lea.vmem %s9, %s770
        %p772 = pneg %p283
        %p773 = pneg %p280
        %p774 = scmp.lt.s32.totalorder %s46, 1
        %s775 = scalar_select %p774, %s46, 1
        %s776 = scalar_lea.vmem %s10, %s775
        %p777 = pneg %p309
        %p778 = pneg %p306
        %s779 = sand.u32 %s41, 1
        %s780 = scalar_lea.sflag [#allocation9], %s779
        %s781 = sand.u32 %s322, 1
        %s782 = scalar_lea.vmem [#allocation8], %s781
        %p783 = pneg %p335
        %p784 = pneg %p332
        %s785 = sand.u32 %s41, 1
        %s786 = scalar_lea.sflag [#allocation9], %s785
        %s787 = sand.u32 %s348, 1
        %s788 = scalar_lea.vmem [#allocation10], %s787
        %p789 = pneg %p361
        %p790 = pneg %p358
        %p791 = scmp.lt.s32.totalorder %s46, 1
        %s792 = scalar_select %p791, %s46, 1
        %s793 = smul.addr %s792, 4
        %s794 = smul.addr %s793, 8
        %s795 = scalar_lea.vmem %s13, %s794
        %p796 = pneg %p387
        %p797 = pneg %p384
        %s798 = sand.u32 %s41, 1
        %s799 = scalar_lea.sflag [#allocation12], %s798
        %s800 = sand.u32 %s400, 1
        %s801 = scalar_lea.vmem [#allocation11], %s800
        %p802 = pneg %p413
        %p803 = pneg %p410
        %p804 = scmp.lt.s32.totalorder %s46, 1
        %s805 = scalar_select %p804, %s46, 1
        %s806 = smul.addr %s805, 8
        %s807 = smul.addr %s806, 8
        %s808 = scalar_lea.vmem %s15, %s807
        %p809 = pneg %p439
        %p810 = pneg %p436
        %s811 = sand.u32 %s41, 1
        %s812 = scalar_lea.sflag [#allocation12], %s811
        %s813 = sand.u32 %s452, 1
        %s814 = scalar_lea.vmem [#allocation13], %s813
        %p815 = pneg %p465
        %p816 = pneg %p462
        %p817 = pneg %p491
        %p818 = pneg %p488
        %s819 = sand.u32 %s478, 1
        %s820 = scalar_lea.sflag [#allocation4], %s819
        %s821 = sand.u32 %s478, 1
        %s822 = smul.addr %s821, 8
        %s823 = scalar_lea.vmem [#allocation14], %s822
        %p824 = scmp.lt.s32.totalorder %s46, 1
        %s825 = scalar_select %p824, %s46, 1
        %s826 = scalar_lea.vmem %s6, %s825
        %p827 = scmp.lt.s32.totalorder %s46, 1
        %s828 = scalar_select %p827, %s46, 1
        %s829 = scalar_lea.vmem %s7, %s828
        %p830 = scmp.lt.s32.totalorder %s46, 1
        %s831 = scalar_select %p830, %s46, 1
        %s832 = smul.addr %s831, 4
        %s833 = smul.addr %s832, 8
        %s834 = scalar_lea.vmem %s8, %s833
        %p835 = scmp.lt.s32.totalorder %s46, 1
        %s836 = scalar_select %p835, %s46, 1
        %s837 = smul.addr %s836, 4
        %s838 = smul.addr %s837, 8
        %s839 = scalar_lea.vmem %s9, %s838
        %p840 = scmp.lt.s32.totalorder %s46, 1
        %s841 = scalar_select %p840, %s46, 1
        %s842 = scalar_lea.vmem %s10, %s841
        %p843 = scmp.lt.s32.totalorder %s46, 1
        %s844 = scalar_select %p843, %s46, 1
        %s845 = smul.addr %s844, 4
        %s846 = smul.addr %s845, 8
        %s847 = scalar_lea.vmem %s13, %s846
        %p848 = scmp.lt.s32.totalorder %s46, 1
        %s849 = scalar_select %p848, %s46, 1
        %s850 = smul.addr %s849, 8
        %s851 = smul.addr %s850, 8
        %s852 = scalar_lea.vmem %s15, %s851
        %p853 = scmp.eq.s32.totalorder %s46, 0
        // Predicated region
        $region117: #{transformer_forward.1} parent=87 // pred_check
          %p854 = pneg %p853
        $region118: #{transformer_forward.1} parent=87 // pred_check_branch
          %856 = sbr.rel (%p854) target = $region120
        $region119: #{transformer_forward.1} parent=87 // pred_region
          %v857 = vld [vmem:[%s688] sm:$0xff]
          %vm858 = vcmask 261120
          %859 = vst.msk [vmem:[%s823] sm:$0xff] %vm858, %v857
        $region120: #{transformer_forward.1} parent=87 // pred_fallthru
          _
        %v860 = vld [vmem:[%s823] sm:$0xff]
        %v861 = vld [vmem:[%s826] sm:$0x1]
        %v862 = vld [vmem:[%s829] sm:$0x1]
        %vm863 = vcmask 261120
        %v864 = vsel %vm863, %v860, 0.0
        %865 = vadd.xlane.f32.xlu0 %v864
        %v866 = vpop.xlane.xlu0 %865
        %v867 = vrcp.pop 32.0
        %v868 = vmul.f32 %v866, %v867
        %v869 = vsub.f32 %v860, %v868
        %v870 = vmul.f32 %v869, %v869
        %v871 = vsel %vm863, %v870, 0.0
        %872 = vadd.xlane.f32.xlu0 %v871
        %v873 = vpop.xlane.xlu0 %872
        %v874 = vmul.f32 %v873, %v867
        %v875 = vadd.f32 %v874, 1e-05
        %v876 = vrsqrt.pop %v875
        %v877 = vmul.f32 %v869, %v876
        %v879 = vlaneseq
        %v880 = vshrl.u32 %v879, 7
        %v881 = vsub.s32 0, %v880
        %v882 = vrot.slane %v861, %v881
        %v884 = vmul.f32 %v877, %v882
        %v886 = vlaneseq
        %v887 = vshrl.u32 %v886, 7
        %v888 = vsub.s32 0, %v887
        %v889 = vrot.slane %v862, %v888
        %v891 = vadd.f32 %v884, %v889
        %v892 = vld [vmem:[%s834] sm:$0xff]
        %v893 = vld [vmem:[%s834 + $0x8] sm:$0xff]
        %v894 = vld [vmem:[%s834 + $0x10] sm:$0xff]
        %v895 = vld [vmem:[%s834 + $0x18] sm:$0xff]
        %v897 = vsel %vm863, %v891, 0
        %899 = vmatprep.subr.mxu0 0.0
        %900 = vmatpush1.msra.mxu0 0.0
        %901 = vmatprep.subr.mxu0 0.0
        %902 = vmatpush1.msra.mxu0 0.0
        %903 = vmatprep.subr.mxu0 0.0
        %904 = vmatpush1.msra.mxu0 0.0
        %905 = vmatprep.subr.mxu0 0.0
        %906 = vmatpush1.msra.mxu0 0.0
        %907 = vmatprep.subr.mxu0 0.0
        %908 = vmatpush1.msra.mxu0 0.0
        %909 = vmatprep.subr.mxu0 0.0
        %910 = vmatpush1.msra.mxu0 0.0
        %911 = vmatprep.subr.mxu0 0.0
        %912 = vmatpush1.msra.mxu0 0.0
        %913 = vmatprep.subr.mxu0 0.0
        %914 = vmatpush1.msra.mxu0 0.0
        %915 = vmatprep.subr.mxu0 0.0
        %916 = vmatpush1.msra.mxu0 0.0
        %917 = vmatprep.subr.mxu0 0.0
        %918 = vmatpush1.msra.mxu0 0.0
        %919 = vmatprep.subr.mxu0 0.0
        %920 = vmatpush1.msra.mxu0 0.0
        %921 = vmatprep.subr.mxu0 0.0
        %922 = vmatpush1.msra.mxu0 0.0
        %923 = vmatprep.subr.mxu0 0.0
        %924 = vmatpush1.msra.mxu0 %v895
        %925 = vmatprep.subr.mxu0 0.0
        %926 = vmatpush1.msra.mxu0 %v894
        %927 = vmatprep.subr.mxu0 0.0
        %928 = vmatpush1.msra.mxu0 %v893
        %929 = vmatprep.subr.mxu0 0.0
        %930 = vmatpush1.msra.mxu0 %v892
        %931 = vmatprep.subr.mxu0 0.0
        %932 = vmatpush2.msra.mxu0 0.0
        %933 = vmatprep.subr.mxu0 0.0
        %934 = vmatpush2.msra.mxu0 0.0
        %935 = vmatprep.subr.mxu0 0.0
        %936 = vmatpush2.msra.mxu0 0.0
        %937 = vmatprep.subr.mxu0 0.0
        %938 = vmatpush2.msra.mxu0 0.0
        %939 = vmatprep.subr.mxu0 0.0
        %940 = vmatpush2.msra.mxu0 0.0
        %941 = vmatprep.subr.mxu0 0.0
        %942 = vmatpush2.msra.mxu0 0.0
        %943 = vmatprep.subr.mxu0 0.0
        %944 = vmatpush2.msra.mxu0 0.0
        %945 = vmatprep.subr.mxu0 0.0
        %946 = vmatpush2.msra.mxu0 0.0
        %947 = vmatprep.subr.mxu0 0.0
        %948 = vmatpush2.msra.mxu0 0.0
        %949 = vmatprep.subr.mxu0 0.0
        %950 = vmatpush2.msra.mxu0 0.0
        %951 = vmatprep.subr.mxu0 0.0
        %952 = vmatpush2.msra.mxu0 0.0
        %953 = vmatprep.subr.mxu0 0.0
        %954 = vmatpush2.msra.mxu0 0.0
        %955 = vmatprep.subr.mxu0 0.0
        %956 = vmatpush2.msra.mxu0 0.0
        %957 = vmatprep.subr.mxu0 0.0
        %958 = vmatpush2.msra.mxu0 0.0
        %959 = vmatprep.subr.mxu0 0.0
        %960 = vmatpush2.msra.mxu0 0.0
        %961 = vmatprep.subr.mxu0 0.0
        %962 = vmatpush2.msra.mxu0 0.0
        %963 = vmatprep.mubr.f32.mxu0 0.0
        %964 = vmatmul.mubr.f32.gmra.mxu0 %v897
        %v965 = vpop.f32.mrf.mxu0
        %v966 = vadd.f32 0.0, %v965
        %v967 = vpop.f32.mrf.mxu0
        %968 = vdwg.mxu0
        %v969 = vlaneseq
        %v970 = vshrl.u32 %v969, 7
        %v971 = vsub.s32 0, %v970
        %v972 = vrot.slane %v966, %v971
        %974 = vrot.lane.b32.xlu0 %v966, 96
        %v975 = vpop.permute.xlu0 %974
        %v977 = vmul.f32 %v972, %v975
        %v978 = vld [vmem:[%s3] sm:$0xff]
        %v979 = vld [vmem:[%s3 + $0x8] sm:$0xff]
        %v980 = vld [vmem:[%s3 + $0x10] sm:$0xff]
        %v981 = vld [vmem:[%s3 + $0x18] sm:$0xff]
        %v983 = vsel %vm863, %v977, 0
        %985 = vmatprep.subr.mxu0 0.0
        %986 = vmatpush1.msra.mxu0 0.0
        %987 = vmatprep.subr.mxu0 0.0
        %988 = vmatpush1.msra.mxu0 0.0
        %989 = vmatprep.subr.mxu0 0.0
        %990 = vmatpush1.msra.mxu0 0.0
        %991 = vmatprep.subr.mxu0 0.0
        %992 = vmatpush1.msra.mxu0 0.0
        %993 = vmatprep.subr.mxu0 0.0
        %994 = vmatpush1.msra.mxu0 0.0
        %995 = vmatprep.subr.mxu0 0.0
        %996 = vmatpush1.msra.mxu0 0.0
        %997 = vmatprep.subr.mxu0 0.0
        %998 = vmatpush1.msra.mxu0 0.0
        %999 = vmatprep.subr.mxu0 0.0
        %1000 = vmatpush1.msra.mxu0 0.0
        %1001 = vmatprep.subr.mxu0 0.0
        %1002 = vmatpush1.msra.mxu0 0.0
        %1003 = vmatprep.subr.mxu0 0.0
        %1004 = vmatpush1.msra.mxu0 0.0
        %1005 = vmatprep.subr.mxu0 0.0
        %1006 = vmatpush1.msra.mxu0 0.0
        %1007 = vmatprep.subr.mxu0 0.0
        %1008 = vmatpush1.msra.mxu0 0.0
        %1009 = vmatprep.subr.mxu0 0.0
        %1010 = vmatpush1.msra.mxu0 %v981
        %1011 = vmatprep.subr.mxu0 0.0
        %1012 = vmatpush1.msra.mxu0 %v980
        %1013 = vmatprep.subr.mxu0 0.0
        %1014 = vmatpush1.msra.mxu0 %v979
        %1015 = vmatprep.subr.mxu0 0.0
        %1016 = vmatpush1.msra.mxu0 %v978
        %1017 = vmatprep.subr.mxu0 0.0
        %1018 = vmatpush2.msra.mxu0 0.0
        %1019 = vmatprep.subr.mxu0 0.0
        %1020 = vmatpush2.msra.mxu0 0.0
        %1021 = vmatprep.subr.mxu0 0.0
        %1022 = vmatpush2.msra.mxu0 0.0
        %1023 = vmatprep.subr.mxu0 0.0
        %1024 = vmatpush2.msra.mxu0 0.0
        %1025 = vmatprep.subr.mxu0 0.0
        %1026 = vmatpush2.msra.mxu0 0.0
        %1027 = vmatprep.subr.mxu0 0.0
        %1028 = vmatpush2.msra.mxu0 0.0
        %1029 = vmatprep.subr.mxu0 0.0
        %1030 = vmatpush2.msra.mxu0 0.0
        %1031 = vmatprep.subr.mxu0 0.0
        %1032 = vmatpush2.msra.mxu0 0.0
        %1033 = vmatprep.subr.mxu0 0.0
        %1034 = vmatpush2.msra.mxu0 0.0
        %1035 = vmatprep.subr.mxu0 0.0
        %1036 = vmatpush2.msra.mxu0 0.0
        %1037 = vmatprep.subr.mxu0 0.0
        %1038 = vmatpush2.msra.mxu0 0.0
        %1039 = vmatprep.subr.mxu0 0.0
        %1040 = vmatpush2.msra.mxu0 0.0
        %1041 = vmatprep.subr.mxu0 0.0
        %1042 = vmatpush2.msra.mxu0 0.0
        %1043 = vmatprep.subr.mxu0 0.0
        %1044 = vmatpush2.msra.mxu0 0.0
        %1045 = vmatprep.subr.mxu0 0.0
        %1046 = vmatpush2.msra.mxu0 0.0
        %1047 = vmatprep.subr.mxu0 0.0
        %1048 = vmatpush2.msra.mxu0 0.0
        %1049 = vmatprep.mubr.f32.mxu0 0.0
        %1050 = vmatmul.mubr.f32.gmra.mxu0 %v983
        %v1051 = vpop.f32.mrf.mxu0
        %v1052 = vadd.f32 0.0, %v1051
        %v1053 = vpop.f32.mrf.mxu0
        %1054 = vdwg.mxu0
        %v1055 = vmul.f32 %v1052, 0.35355338
        %vm1056 = vcmask 31744
        %v1057 = vsel %vm1056, %v1055, -inf
        %v1058 = vrot.slane %v1057, 4
        %v1059 = vmax.f32 %v1057, %v1058
        %v1060 = vrot.slane %v1059, 2
        %v1061 = vmax.f32 %v1059, %v1060
        %v1062 = vrot.slane %v1061, 1
        %v1063 = vmax.f32 %v1061, %v1062
        %v1064 = vsub.f32 %v1055, %v1063
        %v1065 = vmul.f32 %v1064, 1.442695
        %v1066 = vpow.pop %v1065
        %v1067 = vsel %vm1056, %v1066, 0.0
        %v1068 = vrot.slane %v1067, 4
        %v1069 = vadd.f32 %v1067, %v1068
        %v1070 = vrot.slane %v1069, 2
        %v1071 = vadd.f32 %v1069, %v1070
        %v1072 = vrot.slane %v1071, 1
        %v1073 = vadd.f32 %v1071, %v1072
        %v1074 = vrcp.pop %v1073
        %v1075 = vmul.f32 %v1066, %v1074
        %v1076 = vld [vmem:[%s4] sm:$0xf]
        %v1078 = vsel %vm1056, %v1075, 0
        %vm1080 = vcmask 1043456
        %v1082 = vsel %vm1080, %v1076, 0
        %1084 = vmatprep.subr.mxu0 0.0
        %1085 = vmatpush1.msra.mxu0 0.0
        %1086 = vmatprep.subr.mxu0 0.0
        %1087 = vmatpush1.msra.mxu0 0.0
        %1088 = vmatprep.subr.mxu0 0.0
        %1089 = vmatpush1.msra.mxu0 0.0
        %1090 = vmatprep.subr.mxu0 0.0
        %1091 = vmatpush1.msra.mxu0 0.0
        %1092 = vmatprep.subr.mxu0 0.0
        %1093 = vmatpush1.msra.mxu0 0.0
        %1094 = vmatprep.subr.mxu0 0.0
        %1095 = vmatpush1.msra.mxu0 0.0
        %1096 = vmatprep.subr.mxu0 0.0
        %1097 = vmatpush1.msra.mxu0 0.0
        %1098 = vmatprep.subr.mxu0 0.0
        %1099 = vmatpush1.msra.mxu0 0.0
        %1100 = vmatprep.subr.mxu0 0.0
        %1101 = vmatpush1.msra.mxu0 0.0
        %1102 = vmatprep.subr.mxu0 0.0
        %1103 = vmatpush1.msra.mxu0 0.0
        %1104 = vmatprep.subr.mxu0 0.0
        %1105 = vmatpush1.msra.mxu0 0.0
        %1106 = vmatprep.subr.mxu0 0.0
        %1107 = vmatpush1.msra.mxu0 0.0
        %1108 = vmatprep.subr.mxu0 0.0
        %1109 = vmatpush1.msra.mxu0 0.0
        %1110 = vmatprep.subr.mxu0 0.0
        %1111 = vmatpush1.msra.mxu0 0.0
        %1112 = vmatprep.subr.mxu0 0.0
        %1113 = vmatpush1.msra.mxu0 0.0
        %1114 = vmatprep.subr.mxu0 0.0
        %1115 = vmatpush1.msra.mxu0 %v1082
        %1116 = vmatprep.subr.mxu0 0.0
        %1117 = vmatpush2.msra.mxu0 0.0
        %1118 = vmatprep.subr.mxu0 0.0
        %1119 = vmatpush2.msra.mxu0 0.0
        %1120 = vmatprep.subr.mxu0 0.0
        %1121 = vmatpush2.msra.mxu0 0.0
        %1122 = vmatprep.subr.mxu0 0.0
        %1123 = vmatpush2.msra.mxu0 0.0
        %1124 = vmatprep.subr.mxu0 0.0
        %1125 = vmatpush2.msra.mxu0 0.0
        %1126 = vmatprep.subr.mxu0 0.0
        %1127 = vmatpush2.msra.mxu0 0.0
        %1128 = vmatprep.subr.mxu0 0.0
        %1129 = vmatpush2.msra.mxu0 0.0
        %1130 = vmatprep.subr.mxu0 0.0
        %1131 = vmatpush2.msra.mxu0 0.0
        %1132 = vmatprep.subr.mxu0 0.0
        %1133 = vmatpush2.msra.mxu0 0.0
        %1134 = vmatprep.subr.mxu0 0.0
        %1135 = vmatpush2.msra.mxu0 0.0
        %1136 = vmatprep.subr.mxu0 0.0
        %1137 = vmatpush2.msra.mxu0 0.0
        %1138 = vmatprep.subr.mxu0 0.0
        %1139 = vmatpush2.msra.mxu0 0.0
        %1140 = vmatprep.subr.mxu0 0.0
        %1141 = vmatpush2.msra.mxu0 0.0
        %1142 = vmatprep.subr.mxu0 0.0
        %1143 = vmatpush2.msra.mxu0 0.0
        %1144 = vmatprep.subr.mxu0 0.0
        %1145 = vmatpush2.msra.mxu0 0.0
        %1146 = vmatprep.subr.mxu0 0.0
        %1147 = vmatpush2.msra.mxu0 0.0
        %1148 = vmatprep.mubr.f32.mxu0 0.0
        %1149 = vmatmul.mubr.f32.gmra.mxu0 %v1078
        %v1150 = vpop.f32.mrf.mxu0
        %v1151 = vadd.f32 0.0, %v1150
        %v1152 = vpop.f32.mrf.mxu0
        %1153 = vdwg.mxu0
        %1154 = vrot.lane.b32.xlu0 %v966, 64
        %v1155 = vpop.permute.xlu0 %1154
        %v1157 = vmul.f32 %v1151, %v1155
        %v1158 = vsel %vm863, %v1157, 0.0
        %v1159 = vrot.slane %v1158, 4
        %v1160 = vadd.f32 %v1158, %v1159
        %v1161 = vrot.slane %v1160, 2
        %v1162 = vadd.f32 %v1160, %v1161
        %v1163 = vrot.slane %v1162, 1
        %v1164 = vadd.f32 %v1162, %v1163
        %v1165 = vld [vmem:[%s839] sm:$0xff]
        %v1166 = vld [vmem:[%s839 + $0x8] sm:$0xff]
        %v1167 = vld [vmem:[%s839 + $0x10] sm:$0xff]
        %v1168 = vld [vmem:[%s839 + $0x18] sm:$0xff]
        %v1169 = vld [vmem:[%s842] sm:$0x1]
        %v1171 = vsel %vm863, %v1164, 0
        %1173 = vmatprep.subr.mxu0 0.0
        %1174 = vmatpush1.msra.mxu0 0.0
        %1175 = vmatprep.subr.mxu0 0.0
        %1176 = vmatpush1.msra.mxu0 0.0
        %1177 = vmatprep.subr.mxu0 0.0
        %1178 = vmatpush1.msra.mxu0 0.0
        %1179 = vmatprep.subr.mxu0 0.0
        %1180 = vmatpush1.msra.mxu0 0.0
        %1181 = vmatprep.subr.mxu0 0.0
        %1182 = vmatpush1.msra.mxu0 0.0
        %1183 = vmatprep.subr.mxu0 0.0
        %1184 = vmatpush1.msra.mxu0 0.0
        %1185 = vmatprep.subr.mxu0 0.0
        %1186 = vmatpush1.msra.mxu0 0.0
        %1187 = vmatprep.subr.mxu0 0.0
        %1188 = vmatpush1.msra.mxu0 0.0
        %1189 = vmatprep.subr.mxu0 0.0
        %1190 = vmatpush1.msra.mxu0 0.0
        %1191 = vmatprep.subr.mxu0 0.0
        %1192 = vmatpush1.msra.mxu0 0.0
        %1193 = vmatprep.subr.mxu0 0.0
        %1194 = vmatpush1.msra.mxu0 0.0
        %1195 = vmatprep.subr.mxu0 0.0
        %1196 = vmatpush1.msra.mxu0 0.0
        %1197 = vmatprep.subr.mxu0 0.0
        %1198 = vmatpush1.msra.mxu0 %v1168
        %1199 = vmatprep.subr.mxu0 0.0
        %1200 = vmatpush1.msra.mxu0 %v1167
        %1201 = vmatprep.subr.mxu0 0.0
        %1202 = vmatpush1.msra.mxu0 %v1166
        %1203 = vmatprep.subr.mxu0 0.0
        %1204 = vmatpush1.msra.mxu0 %v1165
        %1205 = vmatprep.subr.mxu0 0.0
        %1206 = vmatpush2.msra.mxu0 0.0
        %1207 = vmatprep.subr.mxu0 0.0
        %1208 = vmatpush2.msra.mxu0 0.0
        %1209 = vmatprep.subr.mxu0 0.0
        %1210 = vmatpush2.msra.mxu0 0.0
        %1211 = vmatprep.subr.mxu0 0.0
        %1212 = vmatpush2.msra.mxu0 0.0
        %1213 = vmatprep.subr.mxu0 0.0
        %1214 = vmatpush2.msra.mxu0 0.0
        %1215 = vmatprep.subr.mxu0 0.0
        %1216 = vmatpush2.msra.mxu0 0.0
        %1217 = vmatprep.subr.mxu0 0.0
        %1218 = vmatpush2.msra.mxu0 0.0
        %1219 = vmatprep.subr.mxu0 0.0
        %1220 = vmatpush2.msra.mxu0 0.0
        %1221 = vmatprep.subr.mxu0 0.0
        %1222 = vmatpush2.msra.mxu0 0.0
        %1223 = vmatprep.subr.mxu0 0.0
        %1224 = vmatpush2.msra.mxu0 0.0
        %1225 = vmatprep.subr.mxu0 0.0
        %1226 = vmatpush2.msra.mxu0 0.0
        %1227 = vmatprep.subr.mxu0 0.0
        %1228 = vmatpush2.msra.mxu0 0.0
        %1229 = vmatprep.subr.mxu0 0.0
        %1230 = vmatpush2.msra.mxu0 0.0
        %1231 = vmatprep.subr.mxu0 0.0
        %1232 = vmatpush2.msra.mxu0 0.0
        %1233 = vmatprep.subr.mxu0 0.0
        %1234 = vmatpush2.msra.mxu0 0.0
        %1235 = vmatprep.subr.mxu0 0.0
        %1236 = vmatpush2.msra.mxu0 0.0
        %1237 = vmatprep.mubr.f32.mxu0 0.0
        %1238 = vmatmul.mubr.f32.gmra.mxu0 %v1171
        %v1239 = vpop.f32.mrf.mxu0
        %v1240 = vadd.f32 %v1169, %v1239
        %v1241 = vpop.f32.mrf.mxu0
        %1242 = vdwg.mxu0
        %v1243 = vadd.f32 %v891, %v1240
        %v1244 = vld [vmem:[#allocation5] sm:$0x1]
        %v1245 = vld [vmem:[#allocation7] sm:$0x1]
        %v1247 = vlaneseq
        %v1248 = vshrl.u32 %v1247, 7
        %v1249 = vsub.s32 0, %v1248
        %v1250 = vrot.slane %v1244, %v1249
        %v1252 = vmul.f32 %v877, %v1250
        %v1254 = vlaneseq
        %v1255 = vshrl.u32 %v1254, 7
        %v1256 = vsub.s32 0, %v1255
        %v1257 = vrot.slane %v1245, %v1256
        %v1259 = vadd.f32 %v1252, %v1257
        %v1260 = vld [vmem:[%s5] sm:$0xff]
        %vm1261 = vcmp.gt.f32.partialorder %v1260, 0.5
        %v1262 = vlaneseq
        %v1263 = vshrl.u32 %v1262, 7
        %v1264 = vsub.s32 0, %v1263
        %v1265 = vrot.slane %v1243, %v1264
        %v1266 = vsel %vm1261, %v1265, %v1259
        %v1267 = vld [vmem:[%s704] sm:$0x1]
        %v1268 = vld [vmem:[%s712] sm:$0x1]
        %v1269 = vsel %vm863, %v1266, 0.0
        %1270 = vadd.xlane.f32.xlu0 %v1269
        %v1271 = vpop.xlane.xlu0 %1270
        %v1272 = vmul.f32 %v1271, %v867
        %v1273 = vsub.f32 %v1266, %v1272
        %v1274 = vmul.f32 %v1273, %v1273
        %v1275 = vsel %vm863, %v1274, 0.0
        %1276 = vadd.xlane.f32.xlu0 %v1275
        %v1277 = vpop.xlane.xlu0 %1276
        %v1278 = vmul.f32 %v1277, %v867
        %v1279 = vadd.f32 %v1278, 1e-05
        %v1280 = vrsqrt.pop %v1279
        %v1281 = vmul.f32 %v1273, %v1280
        %v1283 = vlaneseq
        %v1284 = vshrl.u32 %v1283, 7
        %v1285 = vsub.s32 0, %v1284
        %v1286 = vrot.slane %v1267, %v1285
        %v1288 = vmul.f32 %v1281, %v1286
        %v1290 = vlaneseq
        %v1291 = vshrl.u32 %v1290, 7
        %v1292 = vsub.s32 0, %v1291
        %v1293 = vrot.slane %v1268, %v1292
        %v1295 = vadd.f32 %v1288, %v1293
        %v1296 = vld [vmem:[%s847] sm:$0xff]
        %v1297 = vld [vmem:[%s847 + $0x8] sm:$0xff]
        %v1298 = vld [vmem:[%s847 + $0x10] sm:$0xff]
        %v1299 = vld [vmem:[%s847 + $0x18] sm:$0xff]
        %v1300 = vld [vmem:[%s720] sm:$0x1]
        %v1302 = vlaneseq
        %v1303 = vshrl.u32 %v1302, 7
        %v1304 = vsub.s32 0, %v1303
        %v1305 = vrot.slane %v1300, %v1304
        %v1308 = vsel %vm863, %v1295, 0
        %1310 = vmatprep.subr.mxu0 0.0
        %1311 = vmatpush1.msra.mxu0 0.0
        %1312 = vmatprep.subr.mxu0 0.0
        %1313 = vmatpush1.msra.mxu0 0.0
        %1314 = vmatprep.subr.mxu0 0.0
        %1315 = vmatpush1.msra.mxu0 0.0
        %1316 = vmatprep.subr.mxu0 0.0
        %1317 = vmatpush1.msra.mxu0 0.0
        %1318 = vmatprep.subr.mxu0 0.0
        %1319 = vmatpush1.msra.mxu0 0.0
        %1320 = vmatprep.subr.mxu0 0.0
        %1321 = vmatpush1.msra.mxu0 0.0
        %1322 = vmatprep.subr.mxu0 0.0
        %1323 = vmatpush1.msra.mxu0 0.0
        %1324 = vmatprep.subr.mxu0 0.0
        %1325 = vmatpush1.msra.mxu0 0.0
        %1326 = vmatprep.subr.mxu0 0.0
        %1327 = vmatpush1.msra.mxu0 0.0
        %1328 = vmatprep.subr.mxu0 0.0
        %1329 = vmatpush1.msra.mxu0 0.0
        %1330 = vmatprep.subr.mxu0 0.0
        %1331 = vmatpush1.msra.mxu0 0.0
        %1332 = vmatprep.subr.mxu0 0.0
        %1333 = vmatpush1.msra.mxu0 0.0
        %1334 = vmatprep.subr.mxu0 0.0
        %1335 = vmatpush1.msra.mxu0 %v1299
        %1336 = vmatprep.subr.mxu0 0.0
        %1337 = vmatpush1.msra.mxu0 %v1298
        %1338 = vmatprep.subr.mxu0 0.0
        %1339 = vmatpush1.msra.mxu0 %v1297
        %1340 = vmatprep.subr.mxu0 0.0
        %1341 = vmatpush1.msra.mxu0 %v1296
        %1342 = vmatprep.subr.mxu0 0.0
        %1343 = vmatpush2.msra.mxu0 0.0
        %1344 = vmatprep.subr.mxu0 0.0
        %1345 = vmatpush2.msra.mxu0 0.0
        %1346 = vmatprep.subr.mxu0 0.0
        %1347 = vmatpush2.msra.mxu0 0.0
        %1348 = vmatprep.subr.mxu0 0.0
        %1349 = vmatpush2.msra.mxu0 0.0
        %1350 = vmatprep.subr.mxu0 0.0
        %1351 = vmatpush2.msra.mxu0 0.0
        %1352 = vmatprep.subr.mxu0 0.0
        %1353 = vmatpush2.msra.mxu0 0.0
        %1354 = vmatprep.subr.mxu0 0.0
        %1355 = vmatpush2.msra.mxu0 0.0
        %1356 = vmatprep.subr.mxu0 0.0
        %1357 = vmatpush2.msra.mxu0 0.0
        %1358 = vmatprep.subr.mxu0 0.0
        %1359 = vmatpush2.msra.mxu0 0.0
        %1360 = vmatprep.subr.mxu0 0.0
        %1361 = vmatpush2.msra.mxu0 0.0
        %1362 = vmatprep.subr.mxu0 0.0
        %1363 = vmatpush2.msra.mxu0 0.0
        %1364 = vmatprep.subr.mxu0 0.0
        %1365 = vmatpush2.msra.mxu0 0.0
        %1366 = vmatprep.subr.mxu0 0.0
        %1367 = vmatpush2.msra.mxu0 0.0
        %1368 = vmatprep.subr.mxu0 0.0
        %1369 = vmatpush2.msra.mxu0 0.0
        %1370 = vmatprep.subr.mxu0 0.0
        %1371 = vmatpush2.msra.mxu0 0.0
        %1372 = vmatprep.subr.mxu0 0.0
        %1373 = vmatpush2.msra.mxu0 0.0
        %1374 = vmatprep.mubr.f32.mxu0 0.0
        %1375 = vmatmul.mubr.f32.gmra.mxu0 %v1308
        %v1376 = vpop.f32.mrf.mxu0
        %v1377 = vadd.f32 %v1305, %v1376
        %v1378 = vpop.f32.mrf.mxu0
        %1379 = vdwg.mxu0
        %v1380 = vmul.f32 %v1377, 0.5
        %v1381 = vmul.f32 %v1377, 0.70710677
        %vm1382 = vcmp.lt.f32.partialorder %v1381, 0.0
        %v1383 = vsel %vm1382, -1.0, 1.0
        %v1384 = vand.u32 2147483647, %v1381
        %v1385 = vmul.f32 %v1384, 0.3275911
        %v1386 = vadd.f32 %v1385, 1.0
        %v1387 = vrcp.pop %v1386
        %v1388 = vmul.f32 1.0, %v1387
        %v1389 = vmul.f32 %v1388, 1.0614054
        %v1390 = vadd.f32 %v1389, -1.4531521
        %v1391 = vmul.f32 %v1390, %v1388
        %v1392 = vadd.f32 %v1391, 1.4214138
        %v1393 = vmul.f32 %v1392, %v1388
        %v1394 = vadd.f32 %v1393, -0.28449672
        %v1395 = vmul.f32 %v1394, %v1388
        %v1396 = vadd.f32 %v1395, 0.2548296
        %v1397 = vmul.f32 %v1396, %v1388
        %v1398 = vsub.f32 0.0, %v1384
        %v1399 = vmul.f32 %v1398, %v1384
        %v1400 = vmul.f32 %v1399, 1.442695
        %v1401 = vpow.pop %v1400
        %v1402 = vmul.f32 %v1397, %v1401
        %v1403 = vsub.f32 1.0, %v1402
        %v1404 = vmul.f32 %v1383, %v1403
        %v1405 = vadd.f32 %v1404, 1.0
        %v1406 = vmul.f32 %v1380, %v1405
        %v1407 = vld [vmem:[%s852] sm:$0xff]
        %v1408 = vld [vmem:[%s852 + $0x8] sm:$0xff]
        %v1409 = vld [vmem:[%s852 + $0x10] sm:$0xff]
        %v1410 = vld [vmem:[%s852 + $0x18] sm:$0xff]
        %v1411 = vld [vmem:[%s852 + $0x20] sm:$0xff]
        %v1412 = vld [vmem:[%s852 + $0x28] sm:$0xff]
        %v1413 = vld [vmem:[%s852 + $0x30] sm:$0xff]
        %v1414 = vld [vmem:[%s852 + $0x38] sm:$0xff]
        %v1415 = vld [vmem:[%s728] sm:$0x1]
        %v1417 = vlaneseq
        %v1418 = vshrl.u32 %v1417, 7
        %v1419 = vsub.s32 0, %v1418
        %v1420 = vrot.slane %v1415, %v1419
        %vm1422 = vcmask 523264
        %v1424 = vsel %vm1422, %v1406, 0
        %1426 = vmatprep.subr.mxu0 0.0
        %1427 = vmatpush1.msra.mxu0 0.0
        %1428 = vmatprep.subr.mxu0 0.0
        %1429 = vmatpush1.msra.mxu0 0.0
        %1430 = vmatprep.subr.mxu0 0.0
        %1431 = vmatpush1.msra.mxu0 0.0
        %1432 = vmatprep.subr.mxu0 0.0
        %1433 = vmatpush1.msra.mxu0 0.0
        %1434 = vmatprep.subr.mxu0 0.0
        %1435 = vmatpush1.msra.mxu0 0.0
        %1436 = vmatprep.subr.mxu0 0.0
        %1437 = vmatpush1.msra.mxu0 0.0
        %1438 = vmatprep.subr.mxu0 0.0
        %1439 = vmatpush1.msra.mxu0 0.0
        %1440 = vmatprep.subr.mxu0 0.0
        %1441 = vmatpush1.msra.mxu0 0.0
        %1442 = vmatprep.subr.mxu0 0.0
        %1443 = vmatpush1.msra.mxu0 %v1414
        %1444 = vmatprep.subr.mxu0 0.0
        %1445 = vmatpush1.msra.mxu0 %v1413
        %1446 = vmatprep.subr.mxu0 0.0
        %1447 = vmatpush1.msra.mxu0 %v1412
        %1448 = vmatprep.subr.mxu0 0.0
        %1449 = vmatpush1.msra.mxu0 %v1411
        %1450 = vmatprep.subr.mxu0 0.0
        %1451 = vmatpush1.msra.mxu0 %v1410
        %1452 = vmatprep.subr.mxu0 0.0
        %1453 = vmatpush1.msra.mxu0 %v1409
        %1454 = vmatprep.subr.mxu0 0.0
        %1455 = vmatpush1.msra.mxu0 %v1408
        %1456 = vmatprep.subr.mxu0 0.0
        %1457 = vmatpush1.msra.mxu0 %v1407
        %1458 = vmatprep.subr.mxu0 0.0
        %1459 = vmatpush2.msra.mxu0 0.0
        %1460 = vmatprep.subr.mxu0 0.0
        %1461 = vmatpush2.msra.mxu0 0.0
        %1462 = vmatprep.subr.mxu0 0.0
        %1463 = vmatpush2.msra.mxu0 0.0
        %1464 = vmatprep.subr.mxu0 0.0
        %1465 = vmatpush2.msra.mxu0 0.0
        %1466 = vmatprep.subr.mxu0 0.0
        %1467 = vmatpush2.msra.mxu0 0.0
        %1468 = vmatprep.subr.mxu0 0.0
        %1469 = vmatpush2.msra.mxu0 0.0
        %1470 = vmatprep.subr.mxu0 0.0
        %1471 = vmatpush2.msra.mxu0 0.0
        %1472 = vmatprep.subr.mxu0 0.0
        %1473 = vmatpush2.msra.mxu0 0.0
        %1474 = vmatprep.subr.mxu0 0.0
        %1475 = vmatpush2.msra.mxu0 0.0
        %1476 = vmatprep.subr.mxu0 0.0
        %1477 = vmatpush2.msra.mxu0 0.0
        %1478 = vmatprep.subr.mxu0 0.0
        %1479 = vmatpush2.msra.mxu0 0.0
        %1480 = vmatprep.subr.mxu0 0.0
        %1481 = vmatpush2.msra.mxu0 0.0
        %1482 = vmatprep.subr.mxu0 0.0
        %1483 = vmatpush2.msra.mxu0 0.0
        %1484 = vmatprep.subr.mxu0 0.0
        %1485 = vmatpush2.msra.mxu0 0.0
        %1486 = vmatprep.subr.mxu0 0.0
        %1487 = vmatpush2.msra.mxu0 0.0
        %1488 = vmatprep.subr.mxu0 0.0
        %1489 = vmatpush2.msra.mxu0 0.0
        %1490 = vmatprep.mubr.f32.mxu0 0.0
        %1491 = vmatmul.mubr.f32.gmra.mxu0 %v1424
        %v1492 = vpop.f32.mrf.mxu0
        %v1493 = vadd.f32 %v1420, %v1492
        %v1494 = vpop.f32.mrf.mxu0
        %1495 = vdwg.mxu0
        %v1496 = vadd.f32 %v1493, %v1266
        %1497 = vst.msk [vmem:[%s823] sm:$0xff] %vm863, %v1496
        %s1498 = sand.u32 %s478, 1
        %s1499 = scalar_lea.sflag [#allocation4], %s1498
        %s1500 = sand.u32 %s478, 1
        %s1501 = smul.addr %s1500, 8
        %s1502 = scalar_lea.vmem [#allocation14], %s1501
        // Predicated region
        $region121: #{transformer_forward.1} parent=87 // pred_check
          %p1503 = pneg %p488
        $region122: #{transformer_forward.1} parent=87 // pred_check_branch
          %1505 = sbr.rel (%p1503) target = $region124
        $region123: #{transformer_forward.1} parent=87 // pred_region
          %s1507 = ssub.s32 128, 128
          %1508 = vsyncadd %s1499, %s1507
          %s1509 = smul.addr %s45, 128
          %s1510 = scalar_lea.hbm %s17, %s1509
          %s1512 = sshll.u32 %s1502, 4
          %s1513 = int_to_ptr.vmem [resolvable:$true] %s1512
          %1515 = dma.vmem_to_hbm [thread:$0]  %s1513, 128, %s1510, %s1499
        $region124: #{transformer_forward.1} parent=87 // pred_fallthru
          _
      $region88: #{transformer_forward.1} parent=5 // pred_fallthru
        _
      %p1516 = scmp.le.s32.totalorder 2, %s36
      // Predicated region
      $region125: #{transformer_forward.1} parent=5 // pred_check
        %p1517 = pneg %p1516
      $region126: #{transformer_forward.1} parent=5 // pred_check_branch
        %1519 = sbr.rel (%p1517) target = $region128
      $region127: #{transformer_forward.1} parent=5 // pred_region
        %s1520 = ssub.s32 %s36, 2
        // Predicated region
        $region129: #{transformer_forward.1} parent=127 // pred_check
          %p1521 = pneg %p494
        $region130: #{transformer_forward.1} parent=127 // pred_check_branch
          %1523 = sbr.rel (%p1521) target = $region132
        $region131: #{transformer_forward.1} parent=127 // pred_region
          %s1524 = sand.u32 %s479, 1
          %s1525 = scalar_lea.sflag [#allocation4], %s1524
          %s1526 = sand.u32 %s479, 1
          %s1527 = smul.addr %s1526, 8
          %s1528 = scalar_lea.vmem [#allocation14], %s1527
          %1529 = dma.done %s1525, 128
        $region132: #{transformer_forward.1} parent=127 // pred_fallthru
          _
      $region128: #{transformer_forward.1} parent=5 // pred_fallthru
        _
    $region6: #{transformer_forward.1} parent=1 // loop_footer
      %s40 = sadd.s32 1, %s36
    $region7: #{transformer_forward.1} parent=1 // loop_footer_branch
      %35 = sbr.rel target = $region3
    $region8: #{transformer_forward.1} parent=1 // loop_exit
      _
    %1530 = vsyncpa [#allocation3], 1
    %s1531 = scalar_lea.sflag [#allocation3], 1
    %1532 = vsyncpa %s1531, 1
    %1533 = vsyncpa [#allocation6], 1
    %1534 = vsyncpa [#allocation9], 1
    %s1535 = scalar_lea.sflag [#allocation9], 1
    %1536 = vsyncpa %s1535, 1
    %1537 = vsyncpa [#allocation12], 1
    %s1538 = scalar_lea.sflag [#allocation12], 1
    %1539 = vsyncpa %s1538, 1
    %1540 = vsyncpa [#allocation4], 1
    %s1541 = scalar_lea.sflag [#allocation4], 1
    %1542 = vsyncpa %s1541, 1

</llo_original>
